<compile_context>
chip_gen: v7x
topology: tpu7x:2x2x1
jax: 0.10.0
libtpu: 0.0.40
codegen_flags: <defaults>
</compile_context>

<pallas_src>
import math

import jax
import jax.numpy as jnp
from jax.experimental import pallas as pl
from jax.experimental.pallas import tpu as pltpu

# Logical (PyTorch) layer dims: 150 -> 200 -> 250 -> 100 -> 50 -> 1,
# ReLU after every layer (including the last, as in WideOneOutputMLPNet.forward).
_LAYER_DIMS = [(150, 200), (200, 250), (250, 100), (100, 50), (50, 1)]
_LANE = 128


def _round_up(n, m):
    return ((n + m - 1) // m) * m


# ------------------------------------------------------------------ kernel ---


def _wide_mlp_kernel(
    x_ref,
    w1_ref, b1_ref,
    w2_ref, b2_ref,
    w3_ref, b3_ref,
    w4_ref, b4_ref,
    w5_ref, b5_ref,
    o_ref,
):
    """Fused padded 5-layer MLP: relu(h @ W + b) applied 5 times."""
    h = x_ref[...]
    for w_ref, b_ref in (
        (w1_ref, b1_ref),
        (w2_ref, b2_ref),
        (w3_ref, b3_ref),
        (w4_ref, b4_ref),
        (w5_ref, b5_ref),
    ):
        h = jnp.maximum(
            jnp.dot(h, w_ref[...], preferred_element_type=jnp.float32) + b_ref[...],
            0.0,
        )
    # Lane-dense (TILE_B, 128) store; column 0 carries the real scalar output.
    o_ref[...] = h.astype(o_ref.dtype)


# ----------------------------------------------------------------- wrapper ---


def prepare_params(torch_layout_params):
    """torch_layout_params: [(w, b), ...] with w shaped (out, in) like nn.Linear.

    Returns the flat list [W1p, b1p, ..., W5p, b5p] with weights transposed to
    (in, out) and zero-padded to lane multiples; biases padded to (1, out_pad).
    """
    flat = []
    for (w, b), (fan_in, fan_out) in zip(torch_layout_params, _LAYER_DIMS):
        assert w.shape == (fan_out, fan_in), (w.shape, (fan_out, fan_in))
        in_p = _round_up(fan_in, _LANE)
        out_p = _round_up(fan_out, _LANE)
        w_pad = jnp.zeros((in_p, out_p), jnp.float32).at[:fan_in, :fan_out].set(
            jnp.asarray(w, jnp.float32).T
        )
        b_pad = jnp.zeros((1, out_p), jnp.float32).at[0, :fan_out].set(
            jnp.asarray(b, jnp.float32)
        )
        flat.append(w_pad)
        flat.append(b_pad)
    return flat


def wide_one_output_mlp(x, flat_params, *, tile_b=None):
    """x: (B, 150) float32. flat_params: output of prepare_params(). -> (B, 1)."""
    B, F = x.shape
    assert F == _LAYER_DIMS[0][0]
    in_pad = _round_up(F, _LANE)                          # 256
    out_pad = _round_up(_LAYER_DIMS[-1][1], _LANE)        # 128

    if tile_b is None:
        # Largest comfortable tile, capped at 512; always a multiple of 128.
        tile_b = min(512, _round_up(max(B, 1), _LANE))
    b_pad = _round_up(B, tile_b)

    # Pad batch + feature dims with zeros (zero rows flow through as zeros and
    # are sliced off; zero feature lanes contribute nothing to the dots).
    x_p = jnp.zeros((b_pad, in_pad), jnp.float32).at[:B, :F].set(x)

    grid = (pl.cdiv(b_pad, tile_b),)

    x_spec = pl.BlockSpec((tile_b, in_pad), lambda i: (i, 0))
    # Full-array blocks with constant index_map -> parameters stay VMEM-resident
    # across grid steps (Pallas skips the re-DMA when the block index repeats).
    param_specs = [pl.BlockSpec(p.shape, lambda i: (0, 0)) for p in flat_params]
    out_spec = pl.BlockSpec((tile_b, out_pad), lambda i: (i, 0))

    out_padded = pl.pallas_call(
        _wide_mlp_kernel,
        out_shape=jax.ShapeDtypeStruct((b_pad, out_pad), jnp.float32),
        grid=grid,
        in_specs=[x_spec] + param_specs,
        out_specs=out_spec,
        compiler_params=pltpu.CompilerParams(
            dimension_semantics=("parallel",),
        ),
    )(x_p, *flat_params)

    return out_padded[:B, : _LAYER_DIMS[-1][1]]


# ------------------------------------------------------------- param setup ---


def init_params(key):
    """Xavier-normal weights (as in the PyTorch module), zero biases.

    Weights are produced in *torch* layout (out, in) to mirror nn.Linear; the
    transpose to (in, out) happens in prepare_params(), as it would when
    importing real PyTorch parameters.
    """
    params = []
    for fan_in, fan_out in _LAYER_DIMS:
        key, sub = jax.random.split(key)
        std = math.sqrt(2.0 / (fan_in + fan_out))
        w = std * jax.random.normal(sub, (fan_out, fan_in), dtype=jnp.float32)
        b = jnp.zeros((fan_out,), dtype=jnp.float32)
        params.append((w, b))
    return params


def reference_forward(x, torch_layout_params):
    """Pure-JAX reference mirroring WideOneOutputMLPNet.forward (ReLU on all 5)."""
    h = x
    for w, b in torch_layout_params:
        h = jnp.maximum(h @ w.T + b, 0.0)
    return h


# -------------------------------------------------------------------- main ---

if __name__ == "__main__":
    key = jax.random.PRNGKey(0)
    params = init_params(key)
    flat_params = prepare_params(params)

    key, sub = jax.random.split(key)
    B = 8
    x = jax.random.normal(sub, (B, _LAYER_DIMS[0][0]), dtype=jnp.float32)

    out = wide_one_output_mlp(x, flat_params)
    out = jax.block_until_ready(out)

    ref = reference_forward(x, params)
    assert out.shape == (B, 1), out.shape
    assert jnp.allclose(out, ref, atol=1e-5, rtol=1e-5), float(
        jnp.max(jnp.abs(out - ref))
    )

    print("KERNEL_OK")
</pallas_src>

<mosaic_0001>
module attributes {stable_mosaic.version = 11 : i64} {
  func.func @_wide_mlp_kernel(%arg0: i32, %arg1: memref<128x256xf32, #tpu.memory_space<vmem>>, %arg2: memref<256x256xf32, #tpu.memory_space<vmem>>, %arg3: memref<1x256xf32, #tpu.memory_space<vmem>>, %arg4: memref<256x256xf32, #tpu.memory_space<vmem>>, %arg5: memref<1x256xf32, #tpu.memory_space<vmem>>, %arg6: memref<256x128xf32, #tpu.memory_space<vmem>>, %arg7: memref<1x128xf32, #tpu.memory_space<vmem>>, %arg8: memref<128x128xf32, #tpu.memory_space<vmem>>, %arg9: memref<1x128xf32, #tpu.memory_space<vmem>>, %arg10: memref<128x128xf32, #tpu.memory_space<vmem>>, %arg11: memref<1x128xf32, #tpu.memory_space<vmem>>, %arg12: memref<128x128xf32, #tpu.memory_space<vmem>>) attributes {dimension_semantics = [#tpu.dimension_semantics<parallel>], iteration_bounds = array<i64: 1>, scalar_prefetch = 0 : i64, scratch_operands = 0 : i64, tpu.core_type = #tpu.core_type<tc>, window_params = [{transform_indices = @transform_0, window_bounds = array<i64: 128, 256>}, {pipeline_mode = #tpu.pipeline_mode<synchronous>, transform_indices = @transform_1, window_bounds = array<i64: 256, 256>}, {pipeline_mode = #tpu.pipeline_mode<synchronous>, transform_indices = @transform_2, window_bounds = array<i64: 1, 256>}, {pipeline_mode = #tpu.pipeline_mode<synchronous>, transform_indices = @transform_3, window_bounds = array<i64: 256, 256>}, {pipeline_mode = #tpu.pipeline_mode<synchronous>, transform_indices = @transform_4, window_bounds = array<i64: 1, 256>}, {pipeline_mode = #tpu.pipeline_mode<synchronous>, transform_indices = @transform_5, window_bounds = array<i64: 256, 128>}, {pipeline_mode = #tpu.pipeline_mode<synchronous>, transform_indices = @transform_6, window_bounds = array<i64: 1, 128>}, {pipeline_mode = #tpu.pipeline_mode<synchronous>, transform_indices = @transform_7, window_bounds = array<i64: 128, 128>}, {pipeline_mode = #tpu.pipeline_mode<synchronous>, transform_indices = @transform_8, window_bounds = array<i64: 1, 128>}, {pipeline_mode = #tpu.pipeline_mode<synchronous>, transform_indices = @transform_9, window_bounds = array<i64: 128, 128>}, {pipeline_mode = #tpu.pipeline_mode<synchronous>, transform_indices = @transform_10, window_bounds = array<i64: 1, 128>}, {transform_indices = @transform_11, window_bounds = array<i64: 128, 128>}]} {
    %c0 = arith.constant 0 : index
    %c0_0 = arith.constant 0 : index
    %0 = vector.load %arg1[%c0, %c0_0] : memref<128x256xf32, #tpu.memory_space<vmem>>, vector<128x256xf32>
    %c0_1 = arith.constant 0 : index
    %c0_2 = arith.constant 0 : index
    %1 = vector.load %arg2[%c0_1, %c0_2] : memref<256x256xf32, #tpu.memory_space<vmem>>, vector<256x256xf32>
    %cst = arith.constant dense<0.000000e+00> : vector<128x256xf32>
    %2 = tpu.matmul %0, %1, %cst {dimension_numbers = #tpu.dot_dimension_numbers<[1], [0], [0], [1], [0, 0, 1, 1], [], []>} : vector<128x256xf32>, vector<256x256xf32>, vector<128x256xf32> -> vector<128x256xf32>
    %c0_3 = arith.constant 0 : index
    %c0_4 = arith.constant 0 : index
    %3 = vector.load %arg3[%c0_3, %c0_4] : memref<1x256xf32, #tpu.memory_space<vmem>>, vector<1x256xf32>
    %4 = vector.broadcast %3 : vector<1x256xf32> to vector<128x256xf32>
    %5 = arith.addf %2, %4 : vector<128x256xf32>
    %cst_5 = arith.constant 0.000000e+00 : f32
    %6 = vector.broadcast %cst_5 : f32 to vector<128x256xf32>
    %7 = arith.maximumf %5, %6 : vector<128x256xf32>
    %c0_6 = arith.constant 0 : index
    %c0_7 = arith.constant 0 : index
    %8 = vector.load %arg4[%c0_6, %c0_7] : memref<256x256xf32, #tpu.memory_space<vmem>>, vector<256x256xf32>
    %cst_8 = arith.constant dense<0.000000e+00> : vector<128x256xf32>
    %9 = tpu.matmul %7, %8, %cst_8 {dimension_numbers = #tpu.dot_dimension_numbers<[1], [0], [0], [1], [0, 0, 1, 1], [], []>} : vector<128x256xf32>, vector<256x256xf32>, vector<128x256xf32> -> vector<128x256xf32>
    %c0_9 = arith.constant 0 : index
    %c0_10 = arith.constant 0 : index
    %10 = vector.load %arg5[%c0_9, %c0_10] : memref<1x256xf32, #tpu.memory_space<vmem>>, vector<1x256xf32>
    %11 = vector.broadcast %10 : vector<1x256xf32> to vector<128x256xf32>
    %12 = arith.addf %9, %11 : vector<128x256xf32>
    %cst_11 = arith.constant 0.000000e+00 : f32
    %13 = vector.broadcast %cst_11 : f32 to vector<128x256xf32>
    %14 = arith.maximumf %12, %13 : vector<128x256xf32>
    %c0_12 = arith.constant 0 : index
    %c0_13 = arith.constant 0 : index
    %15 = vector.load %arg6[%c0_12, %c0_13] : memref<256x128xf32, #tpu.memory_space<vmem>>, vector<256x128xf32>
    %cst_14 = arith.constant dense<0.000000e+00> : vector<128x128xf32>
    %16 = tpu.matmul %14, %15, %cst_14 {dimension_numbers = #tpu.dot_dimension_numbers<[1], [0], [0], [1], [0, 0, 1, 1], [], []>} : vector<128x256xf32>, vector<256x128xf32>, vector<128x128xf32> -> vector<128x128xf32>
    %c0_15 = arith.constant 0 : index
    %c0_16 = arith.constant 0 : index
    %17 = vector.load %arg7[%c0_15, %c0_16] : memref<1x128xf32, #tpu.memory_space<vmem>>, vector<1x128xf32>
    %18 = vector.broadcast %17 : vector<1x128xf32> to vector<128x128xf32>
    %19 = arith.addf %16, %18 : vector<128x128xf32>
    %cst_17 = arith.constant 0.000000e+00 : f32
    %20 = vector.broadcast %cst_17 : f32 to vector<128x128xf32>
    %21 = arith.maximumf %19, %20 : vector<128x128xf32>
    %c0_18 = arith.constant 0 : index
    %c0_19 = arith.constant 0 : index
    %22 = vector.load %arg8[%c0_18, %c0_19] : memref<128x128xf32, #tpu.memory_space<vmem>>, vector<128x128xf32>
    %cst_20 = arith.constant dense<0.000000e+00> : vector<128x128xf32>
    %23 = tpu.matmul %21, %22, %cst_20 {dimension_numbers = #tpu.dot_dimension_numbers<[1], [0], [0], [1], [0, 0, 1, 1], [], []>} : vector<128x128xf32>, vector<128x128xf32>, vector<128x128xf32> -> vector<128x128xf32>
    %c0_21 = arith.constant 0 : index
    %c0_22 = arith.constant 0 : index
    %24 = vector.load %arg9[%c0_21, %c0_22] : memref<1x128xf32, #tpu.memory_space<vmem>>, vector<1x128xf32>
    %25 = vector.broadcast %24 : vector<1x128xf32> to vector<128x128xf32>
    %26 = arith.addf %23, %25 : vector<128x128xf32>
    %cst_23 = arith.constant 0.000000e+00 : f32
    %27 = vector.broadcast %cst_23 : f32 to vector<128x128xf32>
    %28 = arith.maximumf %26, %27 : vector<128x128xf32>
    %c0_24 = arith.constant 0 : index
    %c0_25 = arith.constant 0 : index
    %29 = vector.load %arg10[%c0_24, %c0_25] : memref<128x128xf32, #tpu.memory_space<vmem>>, vector<128x128xf32>
    %cst_26 = arith.constant dense<0.000000e+00> : vector<128x128xf32>
    %30 = tpu.matmul %28, %29, %cst_26 {dimension_numbers = #tpu.dot_dimension_numbers<[1], [0], [0], [1], [0, 0, 1, 1], [], []>} : vector<128x128xf32>, vector<128x128xf32>, vector<128x128xf32> -> vector<128x128xf32>
    %c0_27 = arith.constant 0 : index
    %c0_28 = arith.constant 0 : index
    %31 = vector.load %arg11[%c0_27, %c0_28] : memref<1x128xf32, #tpu.memory_space<vmem>>, vector<1x128xf32>
    %32 = vector.broadcast %31 : vector<1x128xf32> to vector<128x128xf32>
    %33 = arith.addf %30, %32 : vector<128x128xf32>
    %cst_29 = arith.constant 0.000000e+00 : f32
    %34 = vector.broadcast %cst_29 : f32 to vector<128x128xf32>
    %35 = arith.maximumf %33, %34 : vector<128x128xf32>
    %c0_30 = arith.constant 0 : index
    %c0_31 = arith.constant 0 : index
    %36 = vector.load %arg12[%c0_30, %c0_31] : memref<128x128xf32, #tpu.memory_space<vmem>>, vector<128x128xf32>
    tpu.vector_store %arg12[%c0_30, %c0_31], %35 {strides = array<i32>} : memref<128x128xf32, #tpu.memory_space<vmem>>, vector<128x128xf32>,
    return
  }
  func.func @transform_0(%arg0: i32) -> (i32, i32) {
    %c0_i32 = arith.constant 0 : i32
    %c0_i32_0 = arith.constant 0 : i32
    return %arg0, %c0_i32 : i32, i32
  }
  func.func @transform_1(%arg0: i32) -> (i32, i32) {
    %c0_i32 = arith.constant 0 : i32
    %c0_i32_0 = arith.constant 0 : i32
    %c0_i32_1 = arith.constant 0 : i32
    return %c0_i32, %c0_i32_0 : i32, i32
  }
  func.func @transform_2(%arg0: i32) -> (i32, i32) {
    %c0_i32 = arith.constant 0 : i32
    %c0_i32_0 = arith.constant 0 : i32
    %c0_i32_1 = arith.constant 0 : i32
    return %c0_i32, %c0_i32_0 : i32, i32
  }
  func.func @transform_3(%arg0: i32) -> (i32, i32) {
    %c0_i32 = arith.constant 0 : i32
    %c0_i32_0 = arith.constant 0 : i32
    %c0_i32_1 = arith.constant 0 : i32
    return %c0_i32, %c0_i32_0 : i32, i32
  }
  func.func @transform_4(%arg0: i32) -> (i32, i32) {
    %c0_i32 = arith.constant 0 : i32
    %c0_i32_0 = arith.constant 0 : i32
    %c0_i32_1 = arith.constant 0 : i32
    return %c0_i32, %c0_i32_0 : i32, i32
  }
  func.func @transform_5(%arg0: i32) -> (i32, i32) {
    %c0_i32 = arith.constant 0 : i32
    %c0_i32_0 = arith.constant 0 : i32
    %c0_i32_1 = arith.constant 0 : i32
    return %c0_i32, %c0_i32_0 : i32, i32
  }
  func.func @transform_6(%arg0: i32) -> (i32, i32) {
    %c0_i32 = arith.constant 0 : i32
    %c0_i32_0 = arith.constant 0 : i32
    %c0_i32_1 = arith.constant 0 : i32
    return %c0_i32, %c0_i32_0 : i32, i32
  }
  func.func @transform_7(%arg0: i32) -> (i32, i32) {
    %c0_i32 = arith.constant 0 : i32
    %c0_i32_0 = arith.constant 0 : i32
    %c0_i32_1 = arith.constant 0 : i32
    return %c0_i32, %c0_i32_0 : i32, i32
  }
  func.func @transform_8(%arg0: i32) -> (i32, i32) {
    %c0_i32 = arith.constant 0 : i32
    %c0_i32_0 = arith.constant 0 : i32
    %c0_i32_1 = arith.constant 0 : i32
    return %c0_i32, %c0_i32_0 : i32, i32
  }
  func.func @transform_9(%arg0: i32) -> (i32, i32) {
    %c0_i32 = arith.constant 0 : i32
    %c0_i32_0 = arith.constant 0 : i32
    %c0_i32_1 = arith.constant 0 : i32
    return %c0_i32, %c0_i32_0 : i32, i32
  }
  func.func @transform_10(%arg0: i32) -> (i32, i32) {
    %c0_i32 = arith.constant 0 : i32
    %c0_i32_0 = arith.constant 0 : i32
    %c0_i32_1 = arith.constant 0 : i32
    return %c0_i32, %c0_i32_0 : i32, i32
  }
  func.func @transform_11(%arg0: i32) -> (i32, i32) {
    %c0_i32 = arith.constant 0 : i32
    %c0_i32_0 = arith.constant 0 : i32
    return %arg0, %c0_i32 : i32, i32
  }
}

</mosaic_0001>

<llo_original>
// kernel: tpu_custom_call.1
$region0: #{tpu_custom_call.1}
  #allocation0 [shape = 'u32[]', space=smem, size = 0x4, offset = 0x4, fixed_abs, tag = 'smem constant byte address 0x4 - core index']
  #allocation1 [shape = 'u32[144,128]{1,0:T(1,128)}', space=vmem, size = 0x12000, scoped, tag = 'internal scratch']
  %s0 = inlined_call_operand.hbm [shape: f32[128,256], index: 0, kind: input, shape index: {}]
  %s1 = inlined_call_operand.hbm [shape: f32[256,256], index: 1, kind: input, shape index: {}]
  %s2 = inlined_call_operand.vmem [shape: f32[1,256], index: 2, kind: input, shape index: {}]
  %s3 = inlined_call_operand.hbm [shape: f32[256,256], index: 3, kind: input, shape index: {}]
  %s4 = inlined_call_operand.vmem [shape: f32[1,256], index: 4, kind: input, shape index: {}]
  %s5 = inlined_call_operand.hbm [shape: f32[256,128], index: 5, kind: input, shape index: {}]
  %s6 = inlined_call_operand.vmem [shape: f32[1,128], index: 6, kind: input, shape index: {}]
  %s7 = inlined_call_operand.hbm [shape: f32[128,128], index: 7, kind: input, shape index: {}]
  %s8 = inlined_call_operand.vmem [shape: f32[1,128], index: 8, kind: input, shape index: {}]
  %s9 = inlined_call_operand.hbm [shape: f32[128,128], index: 9, kind: input, shape index: {}]
  %s10 = inlined_call_operand.vmem [shape: f32[1,128], index: 10, kind: input, shape index: {}]
  %s11 = inlined_call_operand.hbm [shape: f32[128,128], index: 11, kind: output, shape index: {}]
  %s12 = sld [smem:[#allocation0]]
  $region78: #{tpu_custom_call.1} parent=0
    _
  %s14 = ssub.s32 1, %s12
  %s15 = scalar_select 0, %s14, %s12
  $region1: #{tpu_custom_call.1} parent=0
    #allocation2 [shape = 'u8[131072]{0}', space=vmem, size = 0x20000, scoped, tag = 'input window, operand 0, single buffered']
    #allocation3 [shape = 's32[1]{0}', space=sflag, size = 0x4, scoped, tag = 'scoped memory for tpu_custom_call.1']
    #allocation4 [shape = 's32[1]{0}', space=sflag, size = 0x4, scoped, tag = 'scoped memory for tpu_custom_call.1']
    #allocation5 [shape = 'u8[262144]{0}', space=vmem, size = 0x40000, scoped, tag = 'input window, operand 1, single buffered']
    #allocation6 [shape = 's32[1]{0}', space=sflag, size = 0x4, scoped, tag = 'scoped memory for tpu_custom_call.1']
    #allocation7 [shape = 'u8[262144]{0}', space=vmem, size = 0x40000, scoped, tag = 'input window, operand 3, single buffered']
    #allocation8 [shape = 'u8[131072]{0}', space=vmem, size = 0x20000, scoped, tag = 'input window, operand 5, single buffered']
    #allocation9 [shape = 's32[1]{0}', space=sflag, size = 0x4, scoped, tag = 'scoped memory for tpu_custom_call.1']
    #allocation10 [shape = 'u8[65536]{0}', space=vmem, size = 0x10000, scoped, tag = 'input window, operand 7, single buffered']
    #allocation11 [shape = 'u8[65536]{0}', space=vmem, size = 0x10000, scoped, tag = 'input window, operand 9, single buffered']
    #allocation12 [shape = 's32[1]{0}', space=sflag, size = 0x4, scoped, tag = 'scoped memory for tpu_custom_call.1']
    #allocation13 [shape = 'u8[65536]{0}', space=vmem, size = 0x10000, scoped, tag = 'output window, operand 0, single buffered']
    %16 = vsyncpa [#allocation3], 0
    %17 = vsyncpa [#allocation6], 0
    %18 = vsyncpa [#allocation9], 0
    %19 = vsyncpa [#allocation12], 0
    %20 = vsyncpa [#allocation4], 0
    // Predicated region
    $region2: #{tpu_custom_call.1} parent=1 // pred_check
      _
    $region3: #{tpu_custom_call.1} parent=1 // pred_check_branch
      %22 = sbr.rel (0) target = $region5
    $region4: #{tpu_custom_call.1} parent=1 // pred_region
      %s24 = ssub.s32 4096, 4096
      %25 = vsyncadd [#allocation3], %s24
      %s26 = sshll.u32 [#allocation2], 4
      %s27 = int_to_ptr.vmem [resolvable:$true] %s26
      %32 = dma.hbm_to_vmem [thread:$0]  %s0, 4096, %s27, [#allocation3], 256, 256, 16
    $region5: #{tpu_custom_call.1} parent=1 // pred_fallthru
      _
    // Predicated region
    $region6: #{tpu_custom_call.1} parent=1 // pred_check
      _
    $region7: #{tpu_custom_call.1} parent=1 // pred_check_branch
      %34 = sbr.rel (0) target = $region9
    $region8: #{tpu_custom_call.1} parent=1 // pred_region
      %s36 = ssub.s32 8192, 8192
      %37 = vsyncadd [#allocation6], %s36
      %s38 = sshll.u32 [#allocation5], 4
      %s39 = int_to_ptr.vmem [resolvable:$true] %s38
      %44 = dma.hbm_to_vmem [thread:$0]  %s1, 8192, %s39, [#allocation6], 256, 256, 16
    $region9: #{tpu_custom_call.1} parent=1 // pred_fallthru
      _
    // Predicated region
    $region10: #{tpu_custom_call.1} parent=1 // pred_check
      _
    $region11: #{tpu_custom_call.1} parent=1 // pred_check_branch
      %46 = sbr.rel (0) target = $region13
    $region12: #{tpu_custom_call.1} parent=1 // pred_region
      _
    $region13: #{tpu_custom_call.1} parent=1 // pred_fallthru
      _
    // Predicated region
    $region14: #{tpu_custom_call.1} parent=1 // pred_check
      _
    $region15: #{tpu_custom_call.1} parent=1 // pred_check_branch
      %48 = sbr.rel (0) target = $region17
    $region16: #{tpu_custom_call.1} parent=1 // pred_region
      %s50 = ssub.s32 8192, 8192
      %51 = vsyncadd [#allocation6], %s50
      %s52 = sshll.u32 [#allocation7], 4
      %s53 = int_to_ptr.vmem [resolvable:$true] %s52
      %58 = dma.hbm_to_vmem [thread:$0]  %s3, 8192, %s53, [#allocation6], 256, 256, 16
    $region17: #{tpu_custom_call.1} parent=1 // pred_fallthru
      _
    // Predicated region
    $region18: #{tpu_custom_call.1} parent=1 // pred_check
      _
    $region19: #{tpu_custom_call.1} parent=1 // pred_check_branch
      %60 = sbr.rel (0) target = $region21
    $region20: #{tpu_custom_call.1} parent=1 // pred_region
      _
    $region21: #{tpu_custom_call.1} parent=1 // pred_fallthru
      _
    // Predicated region
    $region22: #{tpu_custom_call.1} parent=1 // pred_check
      _
    $region23: #{tpu_custom_call.1} parent=1 // pred_check_branch
      %62 = sbr.rel (0) target = $region25
    $region24: #{tpu_custom_call.1} parent=1 // pred_region
      %s64 = ssub.s32 4096, 4096
      %65 = vsyncadd [#allocation9], %s64
      %s66 = sshll.u32 [#allocation8], 4
      %s67 = int_to_ptr.vmem [resolvable:$true] %s66
      %72 = dma.hbm_to_vmem [thread:$0]  %s5, 4096, %s67, [#allocation9], 128, 128, 8
    $region25: #{tpu_custom_call.1} parent=1 // pred_fallthru
      _
    // Predicated region
    $region26: #{tpu_custom_call.1} parent=1 // pred_check
      _
    $region27: #{tpu_custom_call.1} parent=1 // pred_check_branch
      %74 = sbr.rel (0) target = $region29
    $region28: #{tpu_custom_call.1} parent=1 // pred_region
      _
    $region29: #{tpu_custom_call.1} parent=1 // pred_fallthru
      _
    // Predicated region
    $region30: #{tpu_custom_call.1} parent=1 // pred_check
      _
    $region31: #{tpu_custom_call.1} parent=1 // pred_check_branch
      %76 = sbr.rel (0) target = $region33
    $region32: #{tpu_custom_call.1} parent=1 // pred_region
      %s78 = ssub.s32 2048, 2048
      %79 = vsyncadd [#allocation9], %s78
      %s80 = sshll.u32 [#allocation10], 4
      %s81 = int_to_ptr.vmem [resolvable:$true] %s80
      %86 = dma.hbm_to_vmem [thread:$0]  %s7, 2048, %s81, [#allocation9], 128, 128, 8
    $region33: #{tpu_custom_call.1} parent=1 // pred_fallthru
      _
    // Predicated region
    $region34: #{tpu_custom_call.1} parent=1 // pred_check
      _
    $region35: #{tpu_custom_call.1} parent=1 // pred_check_branch
      %88 = sbr.rel (0) target = $region37
    $region36: #{tpu_custom_call.1} parent=1 // pred_region
      _
    $region37: #{tpu_custom_call.1} parent=1 // pred_fallthru
      _
    // Predicated region
    $region38: #{tpu_custom_call.1} parent=1 // pred_check
      _
    $region39: #{tpu_custom_call.1} parent=1 // pred_check_branch
      %90 = sbr.rel (0) target = $region41
    $region40: #{tpu_custom_call.1} parent=1 // pred_region
      %s92 = ssub.s32 2048, 2048
      %93 = vsyncadd [#allocation12], %s92
      %s94 = sshll.u32 [#allocation11], 4
      %s95 = int_to_ptr.vmem [resolvable:$true] %s94
      %100 = dma.hbm_to_vmem [thread:$0]  %s9, 2048, %s95, [#allocation12], 128, 128, 8
    $region41: #{tpu_custom_call.1} parent=1 // pred_fallthru
      _
    // Predicated region
    $region42: #{tpu_custom_call.1} parent=1 // pred_check
      _
    $region43: #{tpu_custom_call.1} parent=1 // pred_check_branch
      %102 = sbr.rel (0) target = $region45
    $region44: #{tpu_custom_call.1} parent=1 // pred_region
      _
    $region45: #{tpu_custom_call.1} parent=1 // pred_fallthru
      _
    // Predicated region
    $region46: #{tpu_custom_call.1} parent=1 // pred_check
      _
    $region47: #{tpu_custom_call.1} parent=1 // pred_check_branch
      %104 = sbr.rel (0) target = $region49
    $region48: #{tpu_custom_call.1} parent=1 // pred_region
      %105 = dma.done [#allocation3], 4096
    $region49: #{tpu_custom_call.1} parent=1 // pred_fallthru
      _
    // Predicated region
    $region50: #{tpu_custom_call.1} parent=1 // pred_check
      _
    $region51: #{tpu_custom_call.1} parent=1 // pred_check_branch
      %107 = sbr.rel (0) target = $region53
    $region52: #{tpu_custom_call.1} parent=1 // pred_region
      %108 = dma.done [#allocation6], 8192
    $region53: #{tpu_custom_call.1} parent=1 // pred_fallthru
      _
    // Predicated region
    $region54: #{tpu_custom_call.1} parent=1 // pred_check
      _
    $region55: #{tpu_custom_call.1} parent=1 // pred_check_branch
      %110 = sbr.rel (0) target = $region57
    $region56: #{tpu_custom_call.1} parent=1 // pred_region
      %111 = dma.done [#allocation6], 8192
    $region57: #{tpu_custom_call.1} parent=1 // pred_fallthru
      _
    // Predicated region
    $region58: #{tpu_custom_call.1} parent=1 // pred_check
      _
    $region59: #{tpu_custom_call.1} parent=1 // pred_check_branch
      %113 = sbr.rel (0) target = $region61
    $region60: #{tpu_custom_call.1} parent=1 // pred_region
      %114 = dma.done [#allocation9], 4096
    $region61: #{tpu_custom_call.1} parent=1 // pred_fallthru
      _
    // Predicated region
    $region62: #{tpu_custom_call.1} parent=1 // pred_check
      _
    $region63: #{tpu_custom_call.1} parent=1 // pred_check_branch
      %116 = sbr.rel (0) target = $region65
    $region64: #{tpu_custom_call.1} parent=1 // pred_region
      %117 = dma.done [#allocation9], 2048
    $region65: #{tpu_custom_call.1} parent=1 // pred_fallthru
      _
    // Predicated region
    $region66: #{tpu_custom_call.1} parent=1 // pred_check
      _
    $region67: #{tpu_custom_call.1} parent=1 // pred_check_branch
      %119 = sbr.rel (0) target = $region69
    $region68: #{tpu_custom_call.1} parent=1 // pred_region
      %120 = dma.done [#allocation12], 2048
    $region69: #{tpu_custom_call.1} parent=1 // pred_fallthru
      _
    %v121 = vld [vmem:[#allocation2] sm:$0xff]
    %v122 = vld [vmem:[#allocation2 + $0x8] sm:$0xff]
    %v123 = vld [vmem:[#allocation2 + $0x10] sm:$0xff]
    %v124 = vld [vmem:[#allocation2 + $0x18] sm:$0xff]
    %v125 = vld [vmem:[#allocation2 + $0x20] sm:$0xff]
    %v126 = vld [vmem:[#allocation2 + $0x28] sm:$0xff]
    %v127 = vld [vmem:[#allocation2 + $0x30] sm:$0xff]
    %v128 = vld [vmem:[#allocation2 + $0x38] sm:$0xff]
    %v129 = vld [vmem:[#allocation2 + $0x40] sm:$0xff]
    %v130 = vld [vmem:[#allocation2 + $0x48] sm:$0xff]
    %v131 = vld [vmem:[#allocation2 + $0x50] sm:$0xff]
    %v132 = vld [vmem:[#allocation2 + $0x58] sm:$0xff]
    %v133 = vld [vmem:[#allocation2 + $0x60] sm:$0xff]
    %v134 = vld [vmem:[#allocation2 + $0x68] sm:$0xff]
    %v135 = vld [vmem:[#allocation2 + $0x70] sm:$0xff]
    %v136 = vld [vmem:[#allocation2 + $0x78] sm:$0xff]
    %v137 = vld [vmem:[#allocation2 + $0x80] sm:$0xff]
    %v138 = vld [vmem:[#allocation2 + $0x88] sm:$0xff]
    %v139 = vld [vmem:[#allocation2 + $0x90] sm:$0xff]
    %v140 = vld [vmem:[#allocation2 + $0x98] sm:$0xff]
    %v141 = vld [vmem:[#allocation2 + $0xa0] sm:$0xff]
    %v142 = vld [vmem:[#allocation2 + $0xa8] sm:$0xff]
    %v143 = vld [vmem:[#allocation2 + $0xb0] sm:$0xff]
    %v144 = vld [vmem:[#allocation2 + $0xb8] sm:$0xff]
    %v145 = vld [vmem:[#allocation2 + $0xc0] sm:$0xff]
    %v146 = vld [vmem:[#allocation2 + $0xc8] sm:$0xff]
    %v147 = vld [vmem:[#allocation2 + $0xd0] sm:$0xff]
    %v148 = vld [vmem:[#allocation2 + $0xd8] sm:$0xff]
    %v149 = vld [vmem:[#allocation2 + $0xe0] sm:$0xff]
    %v150 = vld [vmem:[#allocation2 + $0xe8] sm:$0xff]
    %v151 = vld [vmem:[#allocation2 + $0xf0] sm:$0xff]
    %v152 = vld [vmem:[#allocation2 + $0xf8] sm:$0xff]
    %v153 = vld [vmem:[#allocation5] sm:$0xff]
    %v154 = vld [vmem:[#allocation5 + $0x8] sm:$0xff]
    %v155 = vld [vmem:[#allocation5 + $0x10] sm:$0xff]
    %v156 = vld [vmem:[#allocation5 + $0x18] sm:$0xff]
    %v157 = vld [vmem:[#allocation5 + $0x20] sm:$0xff]
    %v158 = vld [vmem:[#allocation5 + $0x28] sm:$0xff]
    %v159 = vld [vmem:[#allocation5 + $0x30] sm:$0xff]
    %v160 = vld [vmem:[#allocation5 + $0x38] sm:$0xff]
    %v161 = vld [vmem:[#allocation5 + $0x40] sm:$0xff]
    %v162 = vld [vmem:[#allocation5 + $0x48] sm:$0xff]
    %v163 = vld [vmem:[#allocation5 + $0x50] sm:$0xff]
    %v164 = vld [vmem:[#allocation5 + $0x58] sm:$0xff]
    %v165 = vld [vmem:[#allocation5 + $0x60] sm:$0xff]
    %v166 = vld [vmem:[#allocation5 + $0x68] sm:$0xff]
    %v167 = vld [vmem:[#allocation5 + $0x70] sm:$0xff]
    %v168 = vld [vmem:[#allocation5 + $0x78] sm:$0xff]
    %v169 = vld [vmem:[#allocation5 + $0x80] sm:$0xff]
    %v170 = vld [vmem:[#allocation5 + $0x88] sm:$0xff]
    %v171 = vld [vmem:[#allocation5 + $0x90] sm:$0xff]
    %v172 = vld [vmem:[#allocation5 + $0x98] sm:$0xff]
    %v173 = vld [vmem:[#allocation5 + $0xa0] sm:$0xff]
    %v174 = vld [vmem:[#allocation5 + $0xa8] sm:$0xff]
    %v175 = vld [vmem:[#allocation5 + $0xb0] sm:$0xff]
    %v176 = vld [vmem:[#allocation5 + $0xb8] sm:$0xff]
    %v177 = vld [vmem:[#allocation5 + $0xc0] sm:$0xff]
    %v178 = vld [vmem:[#allocation5 + $0xc8] sm:$0xff]
    %v179 = vld [vmem:[#allocation5 + $0xd0] sm:$0xff]
    %v180 = vld [vmem:[#allocation5 + $0xd8] sm:$0xff]
    %v181 = vld [vmem:[#allocation5 + $0xe0] sm:$0xff]
    %v182 = vld [vmem:[#allocation5 + $0xe8] sm:$0xff]
    %v183 = vld [vmem:[#allocation5 + $0xf0] sm:$0xff]
    %v184 = vld [vmem:[#allocation5 + $0xf8] sm:$0xff]
    %v185 = vld [vmem:[#allocation5 + $0x100] sm:$0xff]
    %v186 = vld [vmem:[#allocation5 + $0x108] sm:$0xff]
    %v187 = vld [vmem:[#allocation5 + $0x110] sm:$0xff]
    %v188 = vld [vmem:[#allocation5 + $0x118] sm:$0xff]
    %v189 = vld [vmem:[#allocation5 + $0x120] sm:$0xff]
    %v190 = vld [vmem:[#allocation5 + $0x128] sm:$0xff]
    %v191 = vld [vmem:[#allocation5 + $0x130] sm:$0xff]
    %v192 = vld [vmem:[#allocation5 + $0x138] sm:$0xff]
    %v193 = vld [vmem:[#allocation5 + $0x140] sm:$0xff]
    %v194 = vld [vmem:[#allocation5 + $0x148] sm:$0xff]
    %v195 = vld [vmem:[#allocation5 + $0x150] sm:$0xff]
    %v196 = vld [vmem:[#allocation5 + $0x158] sm:$0xff]
    %v197 = vld [vmem:[#allocation5 + $0x160] sm:$0xff]
    %v198 = vld [vmem:[#allocation5 + $0x168] sm:$0xff]
    %v199 = vld [vmem:[#allocation5 + $0x170] sm:$0xff]
    %v200 = vld [vmem:[#allocation5 + $0x178] sm:$0xff]
    %v201 = vld [vmem:[#allocation5 + $0x180] sm:$0xff]
    %v202 = vld [vmem:[#allocation5 + $0x188] sm:$0xff]
    %v203 = vld [vmem:[#allocation5 + $0x190] sm:$0xff]
    %v204 = vld [vmem:[#allocation5 + $0x198] sm:$0xff]
    %v205 = vld [vmem:[#allocation5 + $0x1a0] sm:$0xff]
    %v206 = vld [vmem:[#allocation5 + $0x1a8] sm:$0xff]
    %v207 = vld [vmem:[#allocation5 + $0x1b0] sm:$0xff]
    %v208 = vld [vmem:[#allocation5 + $0x1b8] sm:$0xff]
    %v209 = vld [vmem:[#allocation5 + $0x1c0] sm:$0xff]
    %v210 = vld [vmem:[#allocation5 + $0x1c8] sm:$0xff]
    %v211 = vld [vmem:[#allocation5 + $0x1d0] sm:$0xff]
    %v212 = vld [vmem:[#allocation5 + $0x1d8] sm:$0xff]
    %v213 = vld [vmem:[#allocation5 + $0x1e0] sm:$0xff]
    %v214 = vld [vmem:[#allocation5 + $0x1e8] sm:$0xff]
    %v215 = vld [vmem:[#allocation5 + $0x1f0] sm:$0xff]
    %v216 = vld [vmem:[#allocation5 + $0x1f8] sm:$0xff]
    %v217 = vld [vmem:[%s2] sm:$0x3]
    %v219 = vlaneseq
    %v220 = vshrl.u32 %v219, 7
    %v221 = vsub.s32 0, %v220
    %v222 = vrot.slane %v217, %v221
    %v223 = vlaneseq
    %v224 = vshrl.u32 %v223, 7
    %v225 = vsub.s32 1, %v224
    %v226 = vrot.slane %v217, %v225
    %229 = vmatprep.subr.mxu0 %v154
    %230 = vmatpush1.msra.mxu0 %v153
    %231 = vmatprep.subr.mxu0 %v156
    %232 = vmatpush1.msra.mxu0 %v155
    %233 = vmatprep.subr.mxu0 %v158
    %234 = vmatpush1.msra.mxu0 %v157
    %235 = vmatprep.subr.mxu0 %v160
    %236 = vmatpush1.msra.mxu0 %v159
    %237 = vmatprep.subr.mxu0 %v162
    %238 = vmatpush1.msra.mxu0 %v161
    %239 = vmatprep.subr.mxu0 %v164
    %240 = vmatpush1.msra.mxu0 %v163
    %241 = vmatprep.subr.mxu0 %v166
    %242 = vmatpush1.msra.mxu0 %v165
    %243 = vmatprep.subr.mxu0 %v168
    %244 = vmatpush1.msra.mxu0 %v167
    %245 = vmatprep.subr.mxu0 %v170
    %246 = vmatpush1.msra.mxu0 %v169
    %247 = vmatprep.subr.mxu0 %v172
    %248 = vmatpush1.msra.mxu0 %v171
    %249 = vmatprep.subr.mxu0 %v174
    %250 = vmatpush1.msra.mxu0 %v173
    %251 = vmatprep.subr.mxu0 %v176
    %252 = vmatpush1.msra.mxu0 %v175
    %253 = vmatprep.subr.mxu0 %v178
    %254 = vmatpush1.msra.mxu0 %v177
    %255 = vmatprep.subr.mxu0 %v180
    %256 = vmatpush1.msra.mxu0 %v179
    %257 = vmatprep.subr.mxu0 %v182
    %258 = vmatpush1.msra.mxu0 %v181
    %259 = vmatprep.subr.mxu0 %v184
    %260 = vmatpush1.msra.mxu0 %v183
    %261 = vmatprep.subr.mxu0 %v186
    %262 = vmatpush1.msra.mxu0 %v185
    %263 = vmatprep.subr.mxu0 %v188
    %264 = vmatpush1.msra.mxu0 %v187
    %265 = vmatprep.subr.mxu0 %v190
    %266 = vmatpush1.msra.mxu0 %v189
    %267 = vmatprep.subr.mxu0 %v192
    %268 = vmatpush1.msra.mxu0 %v191
    %269 = vmatprep.subr.mxu0 %v194
    %270 = vmatpush1.msra.mxu0 %v193
    %271 = vmatprep.subr.mxu0 %v196
    %272 = vmatpush1.msra.mxu0 %v195
    %273 = vmatprep.subr.mxu0 %v198
    %274 = vmatpush1.msra.mxu0 %v197
    %275 = vmatprep.subr.mxu0 %v200
    %276 = vmatpush1.msra.mxu0 %v199
    %277 = vmatprep.subr.mxu0 %v202
    %278 = vmatpush1.msra.mxu0 %v201
    %279 = vmatprep.subr.mxu0 %v204
    %280 = vmatpush1.msra.mxu0 %v203
    %281 = vmatprep.subr.mxu0 %v206
    %282 = vmatpush1.msra.mxu0 %v205
    %283 = vmatprep.subr.mxu0 %v208
    %284 = vmatpush1.msra.mxu0 %v207
    %285 = vmatprep.subr.mxu0 %v210
    %286 = vmatpush1.msra.mxu0 %v209
    %287 = vmatprep.subr.mxu0 %v212
    %288 = vmatpush1.msra.mxu0 %v211
    %289 = vmatprep.subr.mxu0 %v214
    %290 = vmatpush1.msra.mxu0 %v213
    %291 = vmatprep.subr.mxu0 %v216
    %292 = vmatpush1.msra.mxu0 %v215
    %293 = vmatprep.mubr.f32.mxu0 %v122
    %294 = vmatmul.mubr.f32.gmra.mrb[0].mxu0 %v121
    %v295 = vpop.f32.mrb[0].mxu0
    %v296 = vadd.f32 %v222, %v295
    %v297 = vpop.f32.mrb[0].mxu0
    %v298 = vadd.f32 %v226, %v297
    %299 = vmatprep.mubr.f32.mxu0 %v124
    %300 = vmatmul.mubr.f32.gmra.mrb[0].mxu0 %v123
    %v301 = vpop.f32.mrb[0].mxu0
    %v302 = vadd.f32 %v222, %v301
    %v303 = vpop.f32.mrb[0].mxu0
    %v304 = vadd.f32 %v226, %v303
    %305 = vmatprep.mubr.f32.mxu0 %v126
    %306 = vmatmul.mubr.f32.gmra.mrb[0].mxu0 %v125
    %v307 = vpop.f32.mrb[0].mxu0
    %v308 = vadd.f32 %v222, %v307
    %v309 = vpop.f32.mrb[0].mxu0
    %v310 = vadd.f32 %v226, %v309
    %311 = vmatprep.mubr.f32.mxu0 %v128
    %312 = vmatmul.mubr.f32.gmra.mrb[0].mxu0 %v127
    %v313 = vpop.f32.mrb[0].mxu0
    %v314 = vadd.f32 %v222, %v313
    %v315 = vpop.f32.mrb[0].mxu0
    %v316 = vadd.f32 %v226, %v315
    %317 = vmatprep.mubr.f32.mxu0 %v130
    %318 = vmatmul.mubr.f32.gmra.mrb[0].mxu0 %v129
    %v319 = vpop.f32.mrb[0].mxu0
    %v320 = vadd.f32 %v222, %v319
    %v321 = vpop.f32.mrb[0].mxu0
    %v322 = vadd.f32 %v226, %v321
    %323 = vmatprep.mubr.f32.mxu0 %v132
    %324 = vmatmul.mubr.f32.gmra.mrb[0].mxu0 %v131
    %v325 = vpop.f32.mrb[0].mxu0
    %v326 = vadd.f32 %v222, %v325
    %v327 = vpop.f32.mrb[0].mxu0
    %v328 = vadd.f32 %v226, %v327
    %329 = vmatprep.mubr.f32.mxu0 %v134
    %330 = vmatmul.mubr.f32.gmra.mrb[0].mxu0 %v133
    %v331 = vpop.f32.mrb[0].mxu0
    %v332 = vadd.f32 %v222, %v331
    %v333 = vpop.f32.mrb[0].mxu0
    %v334 = vadd.f32 %v226, %v333
    %335 = vmatprep.mubr.f32.mxu0 %v136
    %336 = vmatmul.mubr.f32.gmra.mrb[0].mxu0 %v135
    %v337 = vpop.f32.mrb[0].mxu0
    %v338 = vadd.f32 %v222, %v337
    %v339 = vpop.f32.mrb[0].mxu0
    %v340 = vadd.f32 %v226, %v339
    %341 = vmatprep.mubr.f32.mxu0 %v138
    %342 = vmatmul.mubr.f32.gmra.mrb[0].mxu0 %v137
    %v343 = vpop.f32.mrb[0].mxu0
    %v344 = vadd.f32 %v222, %v343
    %v345 = vpop.f32.mrb[0].mxu0
    %v346 = vadd.f32 %v226, %v345
    %347 = vmatprep.mubr.f32.mxu0 %v140
    %348 = vmatmul.mubr.f32.gmra.mrb[0].mxu0 %v139
    %v349 = vpop.f32.mrb[0].mxu0
    %v350 = vadd.f32 %v222, %v349
    %v351 = vpop.f32.mrb[0].mxu0
    %v352 = vadd.f32 %v226, %v351
    %353 = vmatprep.mubr.f32.mxu0 %v142
    %354 = vmatmul.mubr.f32.gmra.mrb[0].mxu0 %v141
    %v355 = vpop.f32.mrb[0].mxu0
    %v356 = vadd.f32 %v222, %v355
    %v357 = vpop.f32.mrb[0].mxu0
    %v358 = vadd.f32 %v226, %v357
    %359 = vmatprep.mubr.f32.mxu0 %v144
    %360 = vmatmul.mubr.f32.gmra.mrb[0].mxu0 %v143
    %v361 = vpop.f32.mrb[0].mxu0
    %v362 = vadd.f32 %v222, %v361
    %v363 = vpop.f32.mrb[0].mxu0
    %v364 = vadd.f32 %v226, %v363
    %365 = vmatprep.mubr.f32.mxu0 %v146
    %366 = vmatmul.mubr.f32.gmra.mrb[0].mxu0 %v145
    %v367 = vpop.f32.mrb[0].mxu0
    %v368 = vadd.f32 %v222, %v367
    %v369 = vpop.f32.mrb[0].mxu0
    %v370 = vadd.f32 %v226, %v369
    %371 = vmatprep.mubr.f32.mxu0 %v148
    %372 = vmatmul.mubr.f32.gmra.mrb[0].mxu0 %v147
    %v373 = vpop.f32.mrb[0].mxu0
    %v374 = vadd.f32 %v222, %v373
    %v375 = vpop.f32.mrb[0].mxu0
    %v376 = vadd.f32 %v226, %v375
    %377 = vmatprep.mubr.f32.mxu0 %v150
    %378 = vmatmul.mubr.f32.gmra.mrb[0].mxu0 %v149
    %v379 = vpop.f32.mrb[0].mxu0
    %v380 = vadd.f32 %v222, %v379
    %v381 = vpop.f32.mrb[0].mxu0
    %v382 = vadd.f32 %v226, %v381
    %383 = vmatprep.mubr.f32.mxu0 %v152
    %384 = vmatmul.mubr.f32.gmra.mrb[0].mxu0 %v151
    %v385 = vpop.f32.mrb[0].mxu0
    %v386 = vadd.f32 %v222, %v385
    %v387 = vpop.f32.mrb[0].mxu0
    %v388 = vadd.f32 %v226, %v387
    %389 = vdwg.mxu0
    %v390 = vmax.f32 %v296, 0.0
    %v391 = vmax.f32 %v298, 0.0
    %v392 = vmax.f32 %v302, 0.0
    %v393 = vmax.f32 %v304, 0.0
    %v394 = vmax.f32 %v308, 0.0
    %v395 = vmax.f32 %v310, 0.0
    %v396 = vmax.f32 %v314, 0.0
    %v397 = vmax.f32 %v316, 0.0
    %v398 = vmax.f32 %v320, 0.0
    %v399 = vmax.f32 %v322, 0.0
    %v400 = vmax.f32 %v326, 0.0
    %v401 = vmax.f32 %v328, 0.0
    %v402 = vmax.f32 %v332, 0.0
    %v403 = vmax.f32 %v334, 0.0
    %v404 = vmax.f32 %v338, 0.0
    %v405 = vmax.f32 %v340, 0.0
    %v406 = vmax.f32 %v344, 0.0
    %v407 = vmax.f32 %v346, 0.0
    %v408 = vmax.f32 %v350, 0.0
    %v409 = vmax.f32 %v352, 0.0
    %v410 = vmax.f32 %v356, 0.0
    %v411 = vmax.f32 %v358, 0.0
    %v412 = vmax.f32 %v362, 0.0
    %v413 = vmax.f32 %v364, 0.0
    %v414 = vmax.f32 %v368, 0.0
    %v415 = vmax.f32 %v370, 0.0
    %v416 = vmax.f32 %v374, 0.0
    %v417 = vmax.f32 %v376, 0.0
    %v418 = vmax.f32 %v380, 0.0
    %v419 = vmax.f32 %v382, 0.0
    %v420 = vmax.f32 %v386, 0.0
    %v421 = vmax.f32 %v388, 0.0
    %v422 = vld [vmem:[#allocation7] sm:$0xff]
    %v423 = vld [vmem:[#allocation7 + $0x8] sm:$0xff]
    %v424 = vld [vmem:[#allocation7 + $0x10] sm:$0xff]
    %v425 = vld [vmem:[#allocation7 + $0x18] sm:$0xff]
    %v426 = vld [vmem:[#allocation7 + $0x20] sm:$0xff]
    %v427 = vld [vmem:[#allocation7 + $0x28] sm:$0xff]
    %v428 = vld [vmem:[#allocation7 + $0x30] sm:$0xff]
    %v429 = vld [vmem:[#allocation7 + $0x38] sm:$0xff]
    %v430 = vld [vmem:[#allocation7 + $0x40] sm:$0xff]
    %v431 = vld [vmem:[#allocation7 + $0x48] sm:$0xff]
    %v432 = vld [vmem:[#allocation7 + $0x50] sm:$0xff]
    %v433 = vld [vmem:[#allocation7 + $0x58] sm:$0xff]
    %v434 = vld [vmem:[#allocation7 + $0x60] sm:$0xff]
    %v435 = vld [vmem:[#allocation7 + $0x68] sm:$0xff]
    %v436 = vld [vmem:[#allocation7 + $0x70] sm:$0xff]
    %v437 = vld [vmem:[#allocation7 + $0x78] sm:$0xff]
    %v438 = vld [vmem:[#allocation7 + $0x80] sm:$0xff]
    %v439 = vld [vmem:[#allocation7 + $0x88] sm:$0xff]
    %v440 = vld [vmem:[#allocation7 + $0x90] sm:$0xff]
    %v441 = vld [vmem:[#allocation7 + $0x98] sm:$0xff]
    %v442 = vld [vmem:[#allocation7 + $0xa0] sm:$0xff]
    %v443 = vld [vmem:[#allocation7 + $0xa8] sm:$0xff]
    %v444 = vld [vmem:[#allocation7 + $0xb0] sm:$0xff]
    %v445 = vld [vmem:[#allocation7 + $0xb8] sm:$0xff]
    %v446 = vld [vmem:[#allocation7 + $0xc0] sm:$0xff]
    %v447 = vld [vmem:[#allocation7 + $0xc8] sm:$0xff]
    %v448 = vld [vmem:[#allocation7 + $0xd0] sm:$0xff]
    %v449 = vld [vmem:[#allocation7 + $0xd8] sm:$0xff]
    %v450 = vld [vmem:[#allocation7 + $0xe0] sm:$0xff]
    %v451 = vld [vmem:[#allocation7 + $0xe8] sm:$0xff]
    %v452 = vld [vmem:[#allocation7 + $0xf0] sm:$0xff]
    %v453 = vld [vmem:[#allocation7 + $0xf8] sm:$0xff]
    %v454 = vld [vmem:[#allocation7 + $0x100] sm:$0xff]
    %v455 = vld [vmem:[#allocation7 + $0x108] sm:$0xff]
    %v456 = vld [vmem:[#allocation7 + $0x110] sm:$0xff]
    %v457 = vld [vmem:[#allocation7 + $0x118] sm:$0xff]
    %v458 = vld [vmem:[#allocation7 + $0x120] sm:$0xff]
    %v459 = vld [vmem:[#allocation7 + $0x128] sm:$0xff]
    %v460 = vld [vmem:[#allocation7 + $0x130] sm:$0xff]
    %v461 = vld [vmem:[#allocation7 + $0x138] sm:$0xff]
    %v462 = vld [vmem:[#allocation7 + $0x140] sm:$0xff]
    %v463 = vld [vmem:[#allocation7 + $0x148] sm:$0xff]
    %v464 = vld [vmem:[#allocation7 + $0x150] sm:$0xff]
    %v465 = vld [vmem:[#allocation7 + $0x158] sm:$0xff]
    %v466 = vld [vmem:[#allocation7 + $0x160] sm:$0xff]
    %v467 = vld [vmem:[#allocation7 + $0x168] sm:$0xff]
    %v468 = vld [vmem:[#allocation7 + $0x170] sm:$0xff]
    %v469 = vld [vmem:[#allocation7 + $0x178] sm:$0xff]
    %v470 = vld [vmem:[#allocation7 + $0x180] sm:$0xff]
    %v471 = vld [vmem:[#allocation7 + $0x188] sm:$0xff]
    %v472 = vld [vmem:[#allocation7 + $0x190] sm:$0xff]
    %v473 = vld [vmem:[#allocation7 + $0x198] sm:$0xff]
    %v474 = vld [vmem:[#allocation7 + $0x1a0] sm:$0xff]
    %v475 = vld [vmem:[#allocation7 + $0x1a8] sm:$0xff]
    %v476 = vld [vmem:[#allocation7 + $0x1b0] sm:$0xff]
    %v477 = vld [vmem:[#allocation7 + $0x1b8] sm:$0xff]
    %v478 = vld [vmem:[#allocation7 + $0x1c0] sm:$0xff]
    %v479 = vld [vmem:[#allocation7 + $0x1c8] sm:$0xff]
    %v480 = vld [vmem:[#allocation7 + $0x1d0] sm:$0xff]
    %v481 = vld [vmem:[#allocation7 + $0x1d8] sm:$0xff]
    %v482 = vld [vmem:[#allocation7 + $0x1e0] sm:$0xff]
    %v483 = vld [vmem:[#allocation7 + $0x1e8] sm:$0xff]
    %v484 = vld [vmem:[#allocation7 + $0x1f0] sm:$0xff]
    %v485 = vld [vmem:[#allocation7 + $0x1f8] sm:$0xff]
    %v486 = vld [vmem:[%s4] sm:$0x3]
    %v488 = vlaneseq
    %v489 = vshrl.u32 %v488, 7
    %v490 = vsub.s32 0, %v489
    %v491 = vrot.slane %v486, %v490
    %v492 = vlaneseq
    %v493 = vshrl.u32 %v492, 7
    %v494 = vsub.s32 1, %v493
    %v495 = vrot.slane %v486, %v494
    %498 = vmatprep.subr.mxu0 %v423
    %499 = vmatpush1.msra.mxu0 %v422
    %500 = vmatprep.subr.mxu0 %v425
    %501 = vmatpush1.msra.mxu0 %v424
    %502 = vmatprep.subr.mxu0 %v427
    %503 = vmatpush1.msra.mxu0 %v426
    %504 = vmatprep.subr.mxu0 %v429
    %505 = vmatpush1.msra.mxu0 %v428
    %506 = vmatprep.subr.mxu0 %v431
    %507 = vmatpush1.msra.mxu0 %v430
    %508 = vmatprep.subr.mxu0 %v433
    %509 = vmatpush1.msra.mxu0 %v432
    %510 = vmatprep.subr.mxu0 %v435
    %511 = vmatpush1.msra.mxu0 %v434
    %512 = vmatprep.subr.mxu0 %v437
    %513 = vmatpush1.msra.mxu0 %v436
    %514 = vmatprep.subr.mxu0 %v439
    %515 = vmatpush1.msra.mxu0 %v438
    %516 = vmatprep.subr.mxu0 %v441
    %517 = vmatpush1.msra.mxu0 %v440
    %518 = vmatprep.subr.mxu0 %v443
    %519 = vmatpush1.msra.mxu0 %v442
    %520 = vmatprep.subr.mxu0 %v445
    %521 = vmatpush1.msra.mxu0 %v444
    %522 = vmatprep.subr.mxu0 %v447
    %523 = vmatpush1.msra.mxu0 %v446
    %524 = vmatprep.subr.mxu0 %v449
    %525 = vmatpush1.msra.mxu0 %v448
    %526 = vmatprep.subr.mxu0 %v451
    %527 = vmatpush1.msra.mxu0 %v450
    %528 = vmatprep.subr.mxu0 %v453
    %529 = vmatpush1.msra.mxu0 %v452
    %530 = vmatprep.subr.mxu0 %v455
    %531 = vmatpush1.msra.mxu0 %v454
    %532 = vmatprep.subr.mxu0 %v457
    %533 = vmatpush1.msra.mxu0 %v456
    %534 = vmatprep.subr.mxu0 %v459
    %535 = vmatpush1.msra.mxu0 %v458
    %536 = vmatprep.subr.mxu0 %v461
    %537 = vmatpush1.msra.mxu0 %v460
    %538 = vmatprep.subr.mxu0 %v463
    %539 = vmatpush1.msra.mxu0 %v462
    %540 = vmatprep.subr.mxu0 %v465
    %541 = vmatpush1.msra.mxu0 %v464
    %542 = vmatprep.subr.mxu0 %v467
    %543 = vmatpush1.msra.mxu0 %v466
    %544 = vmatprep.subr.mxu0 %v469
    %545 = vmatpush1.msra.mxu0 %v468
    %546 = vmatprep.subr.mxu0 %v471
    %547 = vmatpush1.msra.mxu0 %v470
    %548 = vmatprep.subr.mxu0 %v473
    %549 = vmatpush1.msra.mxu0 %v472
    %550 = vmatprep.subr.mxu0 %v475
    %551 = vmatpush1.msra.mxu0 %v474
    %552 = vmatprep.subr.mxu0 %v477
    %553 = vmatpush1.msra.mxu0 %v476
    %554 = vmatprep.subr.mxu0 %v479
    %555 = vmatpush1.msra.mxu0 %v478
    %556 = vmatprep.subr.mxu0 %v481
    %557 = vmatpush1.msra.mxu0 %v480
    %558 = vmatprep.subr.mxu0 %v483
    %559 = vmatpush1.msra.mxu0 %v482
    %560 = vmatprep.subr.mxu0 %v485
    %561 = vmatpush1.msra.mxu0 %v484
    %562 = vmatprep.mubr.f32.mxu0 %v391
    %563 = vmatmul.mubr.f32.gmra.mrb[0].mxu0 %v390
    %v564 = vpop.f32.mrb[0].mxu0
    %v565 = vadd.f32 %v491, %v564
    %v566 = vpop.f32.mrb[0].mxu0
    %v567 = vadd.f32 %v495, %v566
    %568 = vmatprep.mubr.f32.mxu0 %v393
    %569 = vmatmul.mubr.f32.gmra.mrb[0].mxu0 %v392
    %v570 = vpop.f32.mrb[0].mxu0
    %v571 = vadd.f32 %v491, %v570
    %v572 = vpop.f32.mrb[0].mxu0
    %v573 = vadd.f32 %v495, %v572
    %574 = vmatprep.mubr.f32.mxu0 %v395
    %575 = vmatmul.mubr.f32.gmra.mrb[0].mxu0 %v394
    %v576 = vpop.f32.mrb[0].mxu0
    %v577 = vadd.f32 %v491, %v576
    %v578 = vpop.f32.mrb[0].mxu0
    %v579 = vadd.f32 %v495, %v578
    %580 = vmatprep.mubr.f32.mxu0 %v397
    %581 = vmatmul.mubr.f32.gmra.mrb[0].mxu0 %v396
    %v582 = vpop.f32.mrb[0].mxu0
    %v583 = vadd.f32 %v491, %v582
    %v584 = vpop.f32.mrb[0].mxu0
    %v585 = vadd.f32 %v495, %v584
    %586 = vmatprep.mubr.f32.mxu0 %v399
    %587 = vmatmul.mubr.f32.gmra.mrb[0].mxu0 %v398
    %v588 = vpop.f32.mrb[0].mxu0
    %v589 = vadd.f32 %v491, %v588
    %v590 = vpop.f32.mrb[0].mxu0
    %v591 = vadd.f32 %v495, %v590
    %592 = vmatprep.mubr.f32.mxu0 %v401
    %593 = vmatmul.mubr.f32.gmra.mrb[0].mxu0 %v400
    %v594 = vpop.f32.mrb[0].mxu0
    %v595 = vadd.f32 %v491, %v594
    %v596 = vpop.f32.mrb[0].mxu0
    %v597 = vadd.f32 %v495, %v596
    %598 = vmatprep.mubr.f32.mxu0 %v403
    %599 = vmatmul.mubr.f32.gmra.mrb[0].mxu0 %v402
    %v600 = vpop.f32.mrb[0].mxu0
    %v601 = vadd.f32 %v491, %v600
    %v602 = vpop.f32.mrb[0].mxu0
    %v603 = vadd.f32 %v495, %v602
    %604 = vmatprep.mubr.f32.mxu0 %v405
    %605 = vmatmul.mubr.f32.gmra.mrb[0].mxu0 %v404
    %v606 = vpop.f32.mrb[0].mxu0
    %v607 = vadd.f32 %v491, %v606
    %v608 = vpop.f32.mrb[0].mxu0
    %v609 = vadd.f32 %v495, %v608
    %610 = vmatprep.mubr.f32.mxu0 %v407
    %611 = vmatmul.mubr.f32.gmra.mrb[0].mxu0 %v406
    %v612 = vpop.f32.mrb[0].mxu0
    %v613 = vadd.f32 %v491, %v612
    %v614 = vpop.f32.mrb[0].mxu0
    %v615 = vadd.f32 %v495, %v614
    %616 = vmatprep.mubr.f32.mxu0 %v409
    %617 = vmatmul.mubr.f32.gmra.mrb[0].mxu0 %v408
    %v618 = vpop.f32.mrb[0].mxu0
    %v619 = vadd.f32 %v491, %v618
    %v620 = vpop.f32.mrb[0].mxu0
    %v621 = vadd.f32 %v495, %v620
    %622 = vmatprep.mubr.f32.mxu0 %v411
    %623 = vmatmul.mubr.f32.gmra.mrb[0].mxu0 %v410
    %v624 = vpop.f32.mrb[0].mxu0
    %v625 = vadd.f32 %v491, %v624
    %v626 = vpop.f32.mrb[0].mxu0
    %v627 = vadd.f32 %v495, %v626
    %628 = vmatprep.mubr.f32.mxu0 %v413
    %629 = vmatmul.mubr.f32.gmra.mrb[0].mxu0 %v412
    %v630 = vpop.f32.mrb[0].mxu0
    %v631 = vadd.f32 %v491, %v630
    %v632 = vpop.f32.mrb[0].mxu0
    %v633 = vadd.f32 %v495, %v632
    %634 = vmatprep.mubr.f32.mxu0 %v415
    %635 = vmatmul.mubr.f32.gmra.mrb[0].mxu0 %v414
    %v636 = vpop.f32.mrb[0].mxu0
    %v637 = vadd.f32 %v491, %v636
    %v638 = vpop.f32.mrb[0].mxu0
    %v639 = vadd.f32 %v495, %v638
    %640 = vmatprep.mubr.f32.mxu0 %v417
    %641 = vmatmul.mubr.f32.gmra.mrb[0].mxu0 %v416
    %v642 = vpop.f32.mrb[0].mxu0
    %v643 = vadd.f32 %v491, %v642
    %v644 = vpop.f32.mrb[0].mxu0
    %v645 = vadd.f32 %v495, %v644
    %646 = vmatprep.mubr.f32.mxu0 %v419
    %647 = vmatmul.mubr.f32.gmra.mrb[0].mxu0 %v418
    %v648 = vpop.f32.mrb[0].mxu0
    %v649 = vadd.f32 %v491, %v648
    %v650 = vpop.f32.mrb[0].mxu0
    %v651 = vadd.f32 %v495, %v650
    %652 = vmatprep.mubr.f32.mxu0 %v421
    %653 = vmatmul.mubr.f32.gmra.mrb[0].mxu0 %v420
    %v654 = vpop.f32.mrb[0].mxu0
    %v655 = vadd.f32 %v491, %v654
    %v656 = vpop.f32.mrb[0].mxu0
    %v657 = vadd.f32 %v495, %v656
    %658 = vdwg.mxu0
    %v659 = vmax.f32 %v565, 0.0
    %v660 = vmax.f32 %v567, 0.0
    %v661 = vmax.f32 %v571, 0.0
    %v662 = vmax.f32 %v573, 0.0
    %v663 = vmax.f32 %v577, 0.0
    %v664 = vmax.f32 %v579, 0.0
    %v665 = vmax.f32 %v583, 0.0
    %v666 = vmax.f32 %v585, 0.0
    %v667 = vmax.f32 %v589, 0.0
    %v668 = vmax.f32 %v591, 0.0
    %v669 = vmax.f32 %v595, 0.0
    %v670 = vmax.f32 %v597, 0.0
    %v671 = vmax.f32 %v601, 0.0
    %v672 = vmax.f32 %v603, 0.0
    %v673 = vmax.f32 %v607, 0.0
    %v674 = vmax.f32 %v609, 0.0
    %v675 = vmax.f32 %v613, 0.0
    %v676 = vmax.f32 %v615, 0.0
    %v677 = vmax.f32 %v619, 0.0
    %v678 = vmax.f32 %v621, 0.0
    %v679 = vmax.f32 %v625, 0.0
    %v680 = vmax.f32 %v627, 0.0
    %v681 = vmax.f32 %v631, 0.0
    %v682 = vmax.f32 %v633, 0.0
    %v683 = vmax.f32 %v637, 0.0
    %v684 = vmax.f32 %v639, 0.0
    %v685 = vmax.f32 %v643, 0.0
    %v686 = vmax.f32 %v645, 0.0
    %v687 = vmax.f32 %v649, 0.0
    %v688 = vmax.f32 %v651, 0.0
    %v689 = vmax.f32 %v655, 0.0
    %v690 = vmax.f32 %v657, 0.0
    %v691 = vld [vmem:[#allocation8] sm:$0xff]
    %v692 = vld [vmem:[#allocation8 + $0x8] sm:$0xff]
    %v693 = vld [vmem:[#allocation8 + $0x10] sm:$0xff]
    %v694 = vld [vmem:[#allocation8 + $0x18] sm:$0xff]
    %v695 = vld [vmem:[#allocation8 + $0x20] sm:$0xff]
    %v696 = vld [vmem:[#allocation8 + $0x28] sm:$0xff]
    %v697 = vld [vmem:[#allocation8 + $0x30] sm:$0xff]
    %v698 = vld [vmem:[#allocation8 + $0x38] sm:$0xff]
    %v699 = vld [vmem:[#allocation8 + $0x40] sm:$0xff]
    %v700 = vld [vmem:[#allocation8 + $0x48] sm:$0xff]
    %v701 = vld [vmem:[#allocation8 + $0x50] sm:$0xff]
    %v702 = vld [vmem:[#allocation8 + $0x58] sm:$0xff]
    %v703 = vld [vmem:[#allocation8 + $0x60] sm:$0xff]
    %v704 = vld [vmem:[#allocation8 + $0x68] sm:$0xff]
    %v705 = vld [vmem:[#allocation8 + $0x70] sm:$0xff]
    %v706 = vld [vmem:[#allocation8 + $0x78] sm:$0xff]
    %v707 = vld [vmem:[#allocation8 + $0x80] sm:$0xff]
    %v708 = vld [vmem:[#allocation8 + $0x88] sm:$0xff]
    %v709 = vld [vmem:[#allocation8 + $0x90] sm:$0xff]
    %v710 = vld [vmem:[#allocation8 + $0x98] sm:$0xff]
    %v711 = vld [vmem:[#allocation8 + $0xa0] sm:$0xff]
    %v712 = vld [vmem:[#allocation8 + $0xa8] sm:$0xff]
    %v713 = vld [vmem:[#allocation8 + $0xb0] sm:$0xff]
    %v714 = vld [vmem:[#allocation8 + $0xb8] sm:$0xff]
    %v715 = vld [vmem:[#allocation8 + $0xc0] sm:$0xff]
    %v716 = vld [vmem:[#allocation8 + $0xc8] sm:$0xff]
    %v717 = vld [vmem:[#allocation8 + $0xd0] sm:$0xff]
    %v718 = vld [vmem:[#allocation8 + $0xd8] sm:$0xff]
    %v719 = vld [vmem:[#allocation8 + $0xe0] sm:$0xff]
    %v720 = vld [vmem:[#allocation8 + $0xe8] sm:$0xff]
    %v721 = vld [vmem:[#allocation8 + $0xf0] sm:$0xff]
    %v722 = vld [vmem:[#allocation8 + $0xf8] sm:$0xff]
    %v723 = vld [vmem:[%s6] sm:$0x1]
    %v725 = vlaneseq
    %v726 = vshrl.u32 %v725, 7
    %v727 = vsub.s32 0, %v726
    %v728 = vrot.slane %v723, %v727
    %730 = vmatprep.subr.mxu0 0.0
    %731 = vmatpush1.msra.mxu0 %v691
    %732 = vmatprep.subr.mxu0 0.0
    %733 = vmatpush1.msra.mxu0 %v692
    %734 = vmatprep.subr.mxu0 0.0
    %735 = vmatpush1.msra.mxu0 %v693
    %736 = vmatprep.subr.mxu0 0.0
    %737 = vmatpush1.msra.mxu0 %v694
    %738 = vmatprep.subr.mxu0 0.0
    %739 = vmatpush1.msra.mxu0 %v695
    %740 = vmatprep.subr.mxu0 0.0
    %741 = vmatpush1.msra.mxu0 %v696
    %742 = vmatprep.subr.mxu0 0.0
    %743 = vmatpush1.msra.mxu0 %v697
    %744 = vmatprep.subr.mxu0 0.0
    %745 = vmatpush1.msra.mxu0 %v698
    %746 = vmatprep.subr.mxu0 0.0
    %747 = vmatpush1.msra.mxu0 %v699
    %748 = vmatprep.subr.mxu0 0.0
    %749 = vmatpush1.msra.mxu0 %v700
    %750 = vmatprep.subr.mxu0 0.0
    %751 = vmatpush1.msra.mxu0 %v701
    %752 = vmatprep.subr.mxu0 0.0
    %753 = vmatpush1.msra.mxu0 %v702
    %754 = vmatprep.subr.mxu0 0.0
    %755 = vmatpush1.msra.mxu0 %v703
    %756 = vmatprep.subr.mxu0 0.0
    %757 = vmatpush1.msra.mxu0 %v704
    %758 = vmatprep.subr.mxu0 0.0
    %759 = vmatpush1.msra.mxu0 %v705
    %760 = vmatprep.subr.mxu0 0.0
    %761 = vmatpush1.msra.mxu0 %v706
    %762 = vmatprep.subr.mxu0 0.0
    %763 = vmatpush1.msra.mxu0 %v707
    %764 = vmatprep.subr.mxu0 0.0
    %765 = vmatpush1.msra.mxu0 %v708
    %766 = vmatprep.subr.mxu0 0.0
    %767 = vmatpush1.msra.mxu0 %v709
    %768 = vmatprep.subr.mxu0 0.0
    %769 = vmatpush1.msra.mxu0 %v710
    %770 = vmatprep.subr.mxu0 0.0
    %771 = vmatpush1.msra.mxu0 %v711
    %772 = vmatprep.subr.mxu0 0.0
    %773 = vmatpush1.msra.mxu0 %v712
    %774 = vmatprep.subr.mxu0 0.0
    %775 = vmatpush1.msra.mxu0 %v713
    %776 = vmatprep.subr.mxu0 0.0
    %777 = vmatpush1.msra.mxu0 %v714
    %778 = vmatprep.subr.mxu0 0.0
    %779 = vmatpush1.msra.mxu0 %v715
    %780 = vmatprep.subr.mxu0 0.0
    %781 = vmatpush1.msra.mxu0 %v716
    %782 = vmatprep.subr.mxu0 0.0
    %783 = vmatpush1.msra.mxu0 %v717
    %784 = vmatprep.subr.mxu0 0.0
    %785 = vmatpush1.msra.mxu0 %v718
    %786 = vmatprep.subr.mxu0 0.0
    %787 = vmatpush1.msra.mxu0 %v719
    %788 = vmatprep.subr.mxu0 0.0
    %789 = vmatpush1.msra.mxu0 %v720
    %790 = vmatprep.subr.mxu0 0.0
    %791 = vmatpush1.msra.mxu0 %v721
    %792 = vmatprep.subr.mxu0 0.0
    %793 = vmatpush1.msra.mxu0 %v722
    %794 = vmatprep.mubr.f32.mxu0 %v660
    %795 = vmatmul.mubr.f32.gmra.mrb[0].mxu0 %v659
    %v796 = vpop.f32.mrb[0].mxu0
    %v797 = vadd.f32 %v728, %v796
    %v798 = vpop.f32.mrb[0].mxu0
    %799 = vmatprep.mubr.f32.mxu0 %v662
    %800 = vmatmul.mubr.f32.gmra.mrb[0].mxu0 %v661
    %v801 = vpop.f32.mrb[0].mxu0
    %v802 = vadd.f32 %v728, %v801
    %v803 = vpop.f32.mrb[0].mxu0
    %804 = vmatprep.mubr.f32.mxu0 %v664
    %805 = vmatmul.mubr.f32.gmra.mrb[0].mxu0 %v663
    %v806 = vpop.f32.mrb[0].mxu0
    %v807 = vadd.f32 %v728, %v806
    %v808 = vpop.f32.mrb[0].mxu0
    %809 = vmatprep.mubr.f32.mxu0 %v666
    %810 = vmatmul.mubr.f32.gmra.mrb[0].mxu0 %v665
    %v811 = vpop.f32.mrb[0].mxu0
    %v812 = vadd.f32 %v728, %v811
    %v813 = vpop.f32.mrb[0].mxu0
    %814 = vmatprep.mubr.f32.mxu0 %v668
    %815 = vmatmul.mubr.f32.gmra.mrb[0].mxu0 %v667
    %v816 = vpop.f32.mrb[0].mxu0
    %v817 = vadd.f32 %v728, %v816
    %v818 = vpop.f32.mrb[0].mxu0
    %819 = vmatprep.mubr.f32.mxu0 %v670
    %820 = vmatmul.mubr.f32.gmra.mrb[0].mxu0 %v669
    %v821 = vpop.f32.mrb[0].mxu0
    %v822 = vadd.f32 %v728, %v821
    %v823 = vpop.f32.mrb[0].mxu0
    %824 = vmatprep.mubr.f32.mxu0 %v672
    %825 = vmatmul.mubr.f32.gmra.mrb[0].mxu0 %v671
    %v826 = vpop.f32.mrb[0].mxu0
    %v827 = vadd.f32 %v728, %v826
    %v828 = vpop.f32.mrb[0].mxu0
    %829 = vmatprep.mubr.f32.mxu0 %v674
    %830 = vmatmul.mubr.f32.gmra.mrb[0].mxu0 %v673
    %v831 = vpop.f32.mrb[0].mxu0
    %v832 = vadd.f32 %v728, %v831
    %v833 = vpop.f32.mrb[0].mxu0
    %834 = vmatprep.mubr.f32.mxu0 %v676
    %835 = vmatmul.mubr.f32.gmra.mrb[0].mxu0 %v675
    %v836 = vpop.f32.mrb[0].mxu0
    %v837 = vadd.f32 %v728, %v836
    %v838 = vpop.f32.mrb[0].mxu0
    %839 = vmatprep.mubr.f32.mxu0 %v678
    %840 = vmatmul.mubr.f32.gmra.mrb[0].mxu0 %v677
    %v841 = vpop.f32.mrb[0].mxu0
    %v842 = vadd.f32 %v728, %v841
    %v843 = vpop.f32.mrb[0].mxu0
    %844 = vmatprep.mubr.f32.mxu0 %v680
    %845 = vmatmul.mubr.f32.gmra.mrb[0].mxu0 %v679
    %v846 = vpop.f32.mrb[0].mxu0
    %v847 = vadd.f32 %v728, %v846
    %v848 = vpop.f32.mrb[0].mxu0
    %849 = vmatprep.mubr.f32.mxu0 %v682
    %850 = vmatmul.mubr.f32.gmra.mrb[0].mxu0 %v681
    %v851 = vpop.f32.mrb[0].mxu0
    %v852 = vadd.f32 %v728, %v851
    %v853 = vpop.f32.mrb[0].mxu0
    %854 = vmatprep.mubr.f32.mxu0 %v684
    %855 = vmatmul.mubr.f32.gmra.mrb[0].mxu0 %v683
    %v856 = vpop.f32.mrb[0].mxu0
    %v857 = vadd.f32 %v728, %v856
    %v858 = vpop.f32.mrb[0].mxu0
    %859 = vmatprep.mubr.f32.mxu0 %v686
    %860 = vmatmul.mubr.f32.gmra.mrb[0].mxu0 %v685
    %v861 = vpop.f32.mrb[0].mxu0
    %v862 = vadd.f32 %v728, %v861
    %v863 = vpop.f32.mrb[0].mxu0
    %864 = vmatprep.mubr.f32.mxu0 %v688
    %865 = vmatmul.mubr.f32.gmra.mrb[0].mxu0 %v687
    %v866 = vpop.f32.mrb[0].mxu0
    %v867 = vadd.f32 %v728, %v866
    %v868 = vpop.f32.mrb[0].mxu0
    %869 = vmatprep.mubr.f32.mxu0 %v690
    %870 = vmatmul.mubr.f32.gmra.mrb[0].mxu0 %v689
    %v871 = vpop.f32.mrb[0].mxu0
    %v872 = vadd.f32 %v728, %v871
    %v873 = vpop.f32.mrb[0].mxu0
    %874 = vdwg.mxu0
    %v875 = vmax.f32 %v797, 0.0
    %v876 = vmax.f32 %v802, 0.0
    %v877 = vmax.f32 %v807, 0.0
    %v878 = vmax.f32 %v812, 0.0
    %v879 = vmax.f32 %v817, 0.0
    %v880 = vmax.f32 %v822, 0.0
    %v881 = vmax.f32 %v827, 0.0
    %v882 = vmax.f32 %v832, 0.0
    %v883 = vmax.f32 %v837, 0.0
    %v884 = vmax.f32 %v842, 0.0
    %v885 = vmax.f32 %v847, 0.0
    %v886 = vmax.f32 %v852, 0.0
    %v887 = vmax.f32 %v857, 0.0
    %v888 = vmax.f32 %v862, 0.0
    %v889 = vmax.f32 %v867, 0.0
    %v890 = vmax.f32 %v872, 0.0
    %v891 = vld [vmem:[#allocation10] sm:$0xff]
    %v892 = vld [vmem:[#allocation10 + $0x8] sm:$0xff]
    %v893 = vld [vmem:[#allocation10 + $0x10] sm:$0xff]
    %v894 = vld [vmem:[#allocation10 + $0x18] sm:$0xff]
    %v895 = vld [vmem:[#allocation10 + $0x20] sm:$0xff]
    %v896 = vld [vmem:[#allocation10 + $0x28] sm:$0xff]
    %v897 = vld [vmem:[#allocation10 + $0x30] sm:$0xff]
    %v898 = vld [vmem:[#allocation10 + $0x38] sm:$0xff]
    %v899 = vld [vmem:[#allocation10 + $0x40] sm:$0xff]
    %v900 = vld [vmem:[#allocation10 + $0x48] sm:$0xff]
    %v901 = vld [vmem:[#allocation10 + $0x50] sm:$0xff]
    %v902 = vld [vmem:[#allocation10 + $0x58] sm:$0xff]
    %v903 = vld [vmem:[#allocation10 + $0x60] sm:$0xff]
    %v904 = vld [vmem:[#allocation10 + $0x68] sm:$0xff]
    %v905 = vld [vmem:[#allocation10 + $0x70] sm:$0xff]
    %v906 = vld [vmem:[#allocation10 + $0x78] sm:$0xff]
    %v907 = vld [vmem:[%s8] sm:$0x1]
    %v909 = vlaneseq
    %v910 = vshrl.u32 %v909, 7
    %v911 = vsub.s32 0, %v910
    %v912 = vrot.slane %v907, %v911
    %914 = vmatprep.subr.mxu0 0.0
    %915 = vmatpush1.msra.mxu0 %v891
    %916 = vmatprep.subr.mxu0 0.0
    %917 = vmatpush1.msra.mxu0 %v892
    %918 = vmatprep.subr.mxu0 0.0
    %919 = vmatpush1.msra.mxu0 %v893
    %920 = vmatprep.subr.mxu0 0.0
    %921 = vmatpush1.msra.mxu0 %v894
    %922 = vmatprep.subr.mxu0 0.0
    %923 = vmatpush1.msra.mxu0 %v895
    %924 = vmatprep.subr.mxu0 0.0
    %925 = vmatpush1.msra.mxu0 %v896
    %926 = vmatprep.subr.mxu0 0.0
    %927 = vmatpush1.msra.mxu0 %v897
    %928 = vmatprep.subr.mxu0 0.0
    %929 = vmatpush1.msra.mxu0 %v898
    %930 = vmatprep.subr.mxu0 0.0
    %931 = vmatpush1.msra.mxu0 %v899
    %932 = vmatprep.subr.mxu0 0.0
    %933 = vmatpush1.msra.mxu0 %v900
    %934 = vmatprep.subr.mxu0 0.0
    %935 = vmatpush1.msra.mxu0 %v901
    %936 = vmatprep.subr.mxu0 0.0
    %937 = vmatpush1.msra.mxu0 %v902
    %938 = vmatprep.subr.mxu0 0.0
    %939 = vmatpush1.msra.mxu0 %v903
    %940 = vmatprep.subr.mxu0 0.0
    %941 = vmatpush1.msra.mxu0 %v904
    %942 = vmatprep.subr.mxu0 0.0
    %943 = vmatpush1.msra.mxu0 %v905
    %944 = vmatprep.subr.mxu0 0.0
    %945 = vmatpush1.msra.mxu0 %v906
    %946 = vmatprep.subr.mxu0 0.0
    %947 = vmatpush1.msra.mxu0 0.0
    %948 = vmatprep.subr.mxu0 0.0
    %949 = vmatpush1.msra.mxu0 0.0
    %950 = vmatprep.subr.mxu0 0.0
    %951 = vmatpush1.msra.mxu0 0.0
    %952 = vmatprep.subr.mxu0 0.0
    %953 = vmatpush1.msra.mxu0 0.0
    %954 = vmatprep.subr.mxu0 0.0
    %955 = vmatpush1.msra.mxu0 0.0
    %956 = vmatprep.subr.mxu0 0.0
    %957 = vmatpush1.msra.mxu0 0.0
    %958 = vmatprep.subr.mxu0 0.0
    %959 = vmatpush1.msra.mxu0 0.0
    %960 = vmatprep.subr.mxu0 0.0
    %961 = vmatpush1.msra.mxu0 0.0
    %962 = vmatprep.subr.mxu0 0.0
    %963 = vmatpush1.msra.mxu0 0.0
    %964 = vmatprep.subr.mxu0 0.0
    %965 = vmatpush1.msra.mxu0 0.0
    %966 = vmatprep.subr.mxu0 0.0
    %967 = vmatpush1.msra.mxu0 0.0
    %968 = vmatprep.subr.mxu0 0.0
    %969 = vmatpush1.msra.mxu0 0.0
    %970 = vmatprep.subr.mxu0 0.0
    %971 = vmatpush1.msra.mxu0 0.0
    %972 = vmatprep.subr.mxu0 0.0
    %973 = vmatpush1.msra.mxu0 0.0
    %974 = vmatprep.subr.mxu0 0.0
    %975 = vmatpush1.msra.mxu0 0.0
    %976 = vmatprep.subr.mxu0 0.0
    %977 = vmatpush1.msra.mxu0 0.0
    %978 = vmatprep.mubr.f32.mxu0 0.0
    %979 = vmatmul.mubr.f32.gmra.mrb[0].mxu0 %v875
    %v980 = vpop.f32.mrb[0].mxu0
    %v981 = vadd.f32 %v912, %v980
    %v982 = vpop.f32.mrb[0].mxu0
    %983 = vmatprep.mubr.f32.mxu0 0.0
    %984 = vmatmul.mubr.f32.gmra.mrb[0].mxu0 %v876
    %v985 = vpop.f32.mrb[0].mxu0
    %v986 = vadd.f32 %v912, %v985
    %v987 = vpop.f32.mrb[0].mxu0
    %988 = vmatprep.mubr.f32.mxu0 0.0
    %989 = vmatmul.mubr.f32.gmra.mrb[0].mxu0 %v877
    %v990 = vpop.f32.mrb[0].mxu0
    %v991 = vadd.f32 %v912, %v990
    %v992 = vpop.f32.mrb[0].mxu0
    %993 = vmatprep.mubr.f32.mxu0 0.0
    %994 = vmatmul.mubr.f32.gmra.mrb[0].mxu0 %v878
    %v995 = vpop.f32.mrb[0].mxu0
    %v996 = vadd.f32 %v912, %v995
    %v997 = vpop.f32.mrb[0].mxu0
    %998 = vmatprep.mubr.f32.mxu0 0.0
    %999 = vmatmul.mubr.f32.gmra.mrb[0].mxu0 %v879
    %v1000 = vpop.f32.mrb[0].mxu0
    %v1001 = vadd.f32 %v912, %v1000
    %v1002 = vpop.f32.mrb[0].mxu0
    %1003 = vmatprep.mubr.f32.mxu0 0.0
    %1004 = vmatmul.mubr.f32.gmra.mrb[0].mxu0 %v880
    %v1005 = vpop.f32.mrb[0].mxu0
    %v1006 = vadd.f32 %v912, %v1005
    %v1007 = vpop.f32.mrb[0].mxu0
    %1008 = vmatprep.mubr.f32.mxu0 0.0
    %1009 = vmatmul.mubr.f32.gmra.mrb[0].mxu0 %v881
    %v1010 = vpop.f32.mrb[0].mxu0
    %v1011 = vadd.f32 %v912, %v1010
    %v1012 = vpop.f32.mrb[0].mxu0
    %1013 = vmatprep.mubr.f32.mxu0 0.0
    %1014 = vmatmul.mubr.f32.gmra.mrb[0].mxu0 %v882
    %v1015 = vpop.f32.mrb[0].mxu0
    %v1016 = vadd.f32 %v912, %v1015
    %v1017 = vpop.f32.mrb[0].mxu0
    %1018 = vmatprep.mubr.f32.mxu0 0.0
    %1019 = vmatmul.mubr.f32.gmra.mrb[0].mxu0 %v883
    %v1020 = vpop.f32.mrb[0].mxu0
    %v1021 = vadd.f32 %v912, %v1020
    %v1022 = vpop.f32.mrb[0].mxu0
    %1023 = vmatprep.mubr.f32.mxu0 0.0
    %1024 = vmatmul.mubr.f32.gmra.mrb[0].mxu0 %v884
    %v1025 = vpop.f32.mrb[0].mxu0
    %v1026 = vadd.f32 %v912, %v1025
    %v1027 = vpop.f32.mrb[0].mxu0
    %1028 = vmatprep.mubr.f32.mxu0 0.0
    %1029 = vmatmul.mubr.f32.gmra.mrb[0].mxu0 %v885
    %v1030 = vpop.f32.mrb[0].mxu0
    %v1031 = vadd.f32 %v912, %v1030
    %v1032 = vpop.f32.mrb[0].mxu0
    %1033 = vmatprep.mubr.f32.mxu0 0.0
    %1034 = vmatmul.mubr.f32.gmra.mrb[0].mxu0 %v886
    %v1035 = vpop.f32.mrb[0].mxu0
    %v1036 = vadd.f32 %v912, %v1035
    %v1037 = vpop.f32.mrb[0].mxu0
    %1038 = vmatprep.mubr.f32.mxu0 0.0
    %1039 = vmatmul.mubr.f32.gmra.mrb[0].mxu0 %v887
    %v1040 = vpop.f32.mrb[0].mxu0
    %v1041 = vadd.f32 %v912, %v1040
    %v1042 = vpop.f32.mrb[0].mxu0
    %1043 = vmatprep.mubr.f32.mxu0 0.0
    %1044 = vmatmul.mubr.f32.gmra.mrb[0].mxu0 %v888
    %v1045 = vpop.f32.mrb[0].mxu0
    %v1046 = vadd.f32 %v912, %v1045
    %v1047 = vpop.f32.mrb[0].mxu0
    %1048 = vmatprep.mubr.f32.mxu0 0.0
    %1049 = vmatmul.mubr.f32.gmra.mrb[0].mxu0 %v889
    %v1050 = vpop.f32.mrb[0].mxu0
    %v1051 = vadd.f32 %v912, %v1050
    %v1052 = vpop.f32.mrb[0].mxu0
    %1053 = vmatprep.mubr.f32.mxu0 0.0
    %1054 = vmatmul.mubr.f32.gmra.mrb[0].mxu0 %v890
    %v1055 = vpop.f32.mrb[0].mxu0
    %v1056 = vadd.f32 %v912, %v1055
    %v1057 = vpop.f32.mrb[0].mxu0
    %1058 = vdwg.mxu0
    %v1059 = vmax.f32 %v981, 0.0
    %v1060 = vmax.f32 %v986, 0.0
    %v1061 = vmax.f32 %v991, 0.0
    %v1062 = vmax.f32 %v996, 0.0
    %v1063 = vmax.f32 %v1001, 0.0
    %v1064 = vmax.f32 %v1006, 0.0
    %v1065 = vmax.f32 %v1011, 0.0
    %v1066 = vmax.f32 %v1016, 0.0
    %v1067 = vmax.f32 %v1021, 0.0
    %v1068 = vmax.f32 %v1026, 0.0
    %v1069 = vmax.f32 %v1031, 0.0
    %v1070 = vmax.f32 %v1036, 0.0
    %v1071 = vmax.f32 %v1041, 0.0
    %v1072 = vmax.f32 %v1046, 0.0
    %v1073 = vmax.f32 %v1051, 0.0
    %v1074 = vmax.f32 %v1056, 0.0
    %v1075 = vld [vmem:[#allocation11] sm:$0xff]
    %v1076 = vld [vmem:[#allocation11 + $0x8] sm:$0xff]
    %v1077 = vld [vmem:[#allocation11 + $0x10] sm:$0xff]
    %v1078 = vld [vmem:[#allocation11 + $0x18] sm:$0xff]
    %v1079 = vld [vmem:[#allocation11 + $0x20] sm:$0xff]
    %v1080 = vld [vmem:[#allocation11 + $0x28] sm:$0xff]
    %v1081 = vld [vmem:[#allocation11 + $0x30] sm:$0xff]
    %v1082 = vld [vmem:[#allocation11 + $0x38] sm:$0xff]
    %v1083 = vld [vmem:[#allocation11 + $0x40] sm:$0xff]
    %v1084 = vld [vmem:[#allocation11 + $0x48] sm:$0xff]
    %v1085 = vld [vmem:[#allocation11 + $0x50] sm:$0xff]
    %v1086 = vld [vmem:[#allocation11 + $0x58] sm:$0xff]
    %v1087 = vld [vmem:[#allocation11 + $0x60] sm:$0xff]
    %v1088 = vld [vmem:[#allocation11 + $0x68] sm:$0xff]
    %v1089 = vld [vmem:[#allocation11 + $0x70] sm:$0xff]
    %v1090 = vld [vmem:[#allocation11 + $0x78] sm:$0xff]
    %v1091 = vld [vmem:[%s10] sm:$0x1]
    %v1093 = vlaneseq
    %v1094 = vshrl.u32 %v1093, 7
    %v1095 = vsub.s32 0, %v1094
    %v1096 = vrot.slane %v1091, %v1095
    %1098 = vmatprep.subr.mxu0 0.0
    %1099 = vmatpush1.msra.mxu0 %v1075
    %1100 = vmatprep.subr.mxu0 0.0
    %1101 = vmatpush1.msra.mxu0 %v1076
    %1102 = vmatprep.subr.mxu0 0.0
    %1103 = vmatpush1.msra.mxu0 %v1077
    %1104 = vmatprep.subr.mxu0 0.0
    %1105 = vmatpush1.msra.mxu0 %v1078
    %1106 = vmatprep.subr.mxu0 0.0
    %1107 = vmatpush1.msra.mxu0 %v1079
    %1108 = vmatprep.subr.mxu0 0.0
    %1109 = vmatpush1.msra.mxu0 %v1080
    %1110 = vmatprep.subr.mxu0 0.0
    %1111 = vmatpush1.msra.mxu0 %v1081
    %1112 = vmatprep.subr.mxu0 0.0
    %1113 = vmatpush1.msra.mxu0 %v1082
    %1114 = vmatprep.subr.mxu0 0.0
    %1115 = vmatpush1.msra.mxu0 %v1083
    %1116 = vmatprep.subr.mxu0 0.0
    %1117 = vmatpush1.msra.mxu0 %v1084
    %1118 = vmatprep.subr.mxu0 0.0
    %1119 = vmatpush1.msra.mxu0 %v1085
    %1120 = vmatprep.subr.mxu0 0.0
    %1121 = vmatpush1.msra.mxu0 %v1086
    %1122 = vmatprep.subr.mxu0 0.0
    %1123 = vmatpush1.msra.mxu0 %v1087
    %1124 = vmatprep.subr.mxu0 0.0
    %1125 = vmatpush1.msra.mxu0 %v1088
    %1126 = vmatprep.subr.mxu0 0.0
    %1127 = vmatpush1.msra.mxu0 %v1089
    %1128 = vmatprep.subr.mxu0 0.0
    %1129 = vmatpush1.msra.mxu0 %v1090
    %1130 = vmatprep.subr.mxu0 0.0
    %1131 = vmatpush1.msra.mxu0 0.0
    %1132 = vmatprep.subr.mxu0 0.0
    %1133 = vmatpush1.msra.mxu0 0.0
    %1134 = vmatprep.subr.mxu0 0.0
    %1135 = vmatpush1.msra.mxu0 0.0
    %1136 = vmatprep.subr.mxu0 0.0
    %1137 = vmatpush1.msra.mxu0 0.0
    %1138 = vmatprep.subr.mxu0 0.0
    %1139 = vmatpush1.msra.mxu0 0.0
    %1140 = vmatprep.subr.mxu0 0.0
    %1141 = vmatpush1.msra.mxu0 0.0
    %1142 = vmatprep.subr.mxu0 0.0
    %1143 = vmatpush1.msra.mxu0 0.0
    %1144 = vmatprep.subr.mxu0 0.0
    %1145 = vmatpush1.msra.mxu0 0.0
    %1146 = vmatprep.subr.mxu0 0.0
    %1147 = vmatpush1.msra.mxu0 0.0
    %1148 = vmatprep.subr.mxu0 0.0
    %1149 = vmatpush1.msra.mxu0 0.0
    %1150 = vmatprep.subr.mxu0 0.0
    %1151 = vmatpush1.msra.mxu0 0.0
    %1152 = vmatprep.subr.mxu0 0.0
    %1153 = vmatpush1.msra.mxu0 0.0
    %1154 = vmatprep.subr.mxu0 0.0
    %1155 = vmatpush1.msra.mxu0 0.0
    %1156 = vmatprep.subr.mxu0 0.0
    %1157 = vmatpush1.msra.mxu0 0.0
    %1158 = vmatprep.subr.mxu0 0.0
    %1159 = vmatpush1.msra.mxu0 0.0
    %1160 = vmatprep.subr.mxu0 0.0
    %1161 = vmatpush1.msra.mxu0 0.0
    %1162 = vmatprep.mubr.f32.mxu0 0.0
    %1163 = vmatmul.mubr.f32.gmra.mrb[0].mxu0 %v1059
    %v1164 = vpop.f32.mrb[0].mxu0
    %v1165 = vadd.f32 %v1096, %v1164
    %v1166 = vpop.f32.mrb[0].mxu0
    %1167 = vmatprep.mubr.f32.mxu0 0.0
    %1168 = vmatmul.mubr.f32.gmra.mrb[0].mxu0 %v1060
    %v1169 = vpop.f32.mrb[0].mxu0
    %v1170 = vadd.f32 %v1096, %v1169
    %v1171 = vpop.f32.mrb[0].mxu0
    %1172 = vmatprep.mubr.f32.mxu0 0.0
    %1173 = vmatmul.mubr.f32.gmra.mrb[0].mxu0 %v1061
    %v1174 = vpop.f32.mrb[0].mxu0
    %v1175 = vadd.f32 %v1096, %v1174
    %v1176 = vpop.f32.mrb[0].mxu0
    %1177 = vmatprep.mubr.f32.mxu0 0.0
    %1178 = vmatmul.mubr.f32.gmra.mrb[0].mxu0 %v1062
    %v1179 = vpop.f32.mrb[0].mxu0
    %v1180 = vadd.f32 %v1096, %v1179
    %v1181 = vpop.f32.mrb[0].mxu0
    %1182 = vmatprep.mubr.f32.mxu0 0.0
    %1183 = vmatmul.mubr.f32.gmra.mrb[0].mxu0 %v1063
    %v1184 = vpop.f32.mrb[0].mxu0
    %v1185 = vadd.f32 %v1096, %v1184
    %v1186 = vpop.f32.mrb[0].mxu0
    %1187 = vmatprep.mubr.f32.mxu0 0.0
    %1188 = vmatmul.mubr.f32.gmra.mrb[0].mxu0 %v1064
    %v1189 = vpop.f32.mrb[0].mxu0
    %v1190 = vadd.f32 %v1096, %v1189
    %v1191 = vpop.f32.mrb[0].mxu0
    %1192 = vmatprep.mubr.f32.mxu0 0.0
    %1193 = vmatmul.mubr.f32.gmra.mrb[0].mxu0 %v1065
    %v1194 = vpop.f32.mrb[0].mxu0
    %v1195 = vadd.f32 %v1096, %v1194
    %v1196 = vpop.f32.mrb[0].mxu0
    %1197 = vmatprep.mubr.f32.mxu0 0.0
    %1198 = vmatmul.mubr.f32.gmra.mrb[0].mxu0 %v1066
    %v1199 = vpop.f32.mrb[0].mxu0
    %v1200 = vadd.f32 %v1096, %v1199
    %v1201 = vpop.f32.mrb[0].mxu0
    %1202 = vmatprep.mubr.f32.mxu0 0.0
    %1203 = vmatmul.mubr.f32.gmra.mrb[0].mxu0 %v1067
    %v1204 = vpop.f32.mrb[0].mxu0
    %v1205 = vadd.f32 %v1096, %v1204
    %v1206 = vpop.f32.mrb[0].mxu0
    %1207 = vmatprep.mubr.f32.mxu0 0.0
    %1208 = vmatmul.mubr.f32.gmra.mrb[0].mxu0 %v1068
    %v1209 = vpop.f32.mrb[0].mxu0
    %v1210 = vadd.f32 %v1096, %v1209
    %v1211 = vpop.f32.mrb[0].mxu0
    %1212 = vmatprep.mubr.f32.mxu0 0.0
    %1213 = vmatmul.mubr.f32.gmra.mrb[0].mxu0 %v1069
    %v1214 = vpop.f32.mrb[0].mxu0
    %v1215 = vadd.f32 %v1096, %v1214
    %v1216 = vpop.f32.mrb[0].mxu0
    %1217 = vmatprep.mubr.f32.mxu0 0.0
    %1218 = vmatmul.mubr.f32.gmra.mrb[0].mxu0 %v1070
    %v1219 = vpop.f32.mrb[0].mxu0
    %v1220 = vadd.f32 %v1096, %v1219
    %v1221 = vpop.f32.mrb[0].mxu0
    %1222 = vmatprep.mubr.f32.mxu0 0.0
    %1223 = vmatmul.mubr.f32.gmra.mrb[0].mxu0 %v1071
    %v1224 = vpop.f32.mrb[0].mxu0
    %v1225 = vadd.f32 %v1096, %v1224
    %v1226 = vpop.f32.mrb[0].mxu0
    %1227 = vmatprep.mubr.f32.mxu0 0.0
    %1228 = vmatmul.mubr.f32.gmra.mrb[0].mxu0 %v1072
    %v1229 = vpop.f32.mrb[0].mxu0
    %v1230 = vadd.f32 %v1096, %v1229
    %v1231 = vpop.f32.mrb[0].mxu0
    %1232 = vmatprep.mubr.f32.mxu0 0.0
    %1233 = vmatmul.mubr.f32.gmra.mrb[0].mxu0 %v1073
    %v1234 = vpop.f32.mrb[0].mxu0
    %v1235 = vadd.f32 %v1096, %v1234
    %v1236 = vpop.f32.mrb[0].mxu0
    %1237 = vmatprep.mubr.f32.mxu0 0.0
    %1238 = vmatmul.mubr.f32.gmra.mrb[0].mxu0 %v1074
    %v1239 = vpop.f32.mrb[0].mxu0
    %v1240 = vadd.f32 %v1096, %v1239
    %v1241 = vpop.f32.mrb[0].mxu0
    %1242 = vdwg.mxu0
    %v1243 = vmax.f32 %v1165, 0.0
    %v1244 = vmax.f32 %v1170, 0.0
    %v1245 = vmax.f32 %v1175, 0.0
    %v1246 = vmax.f32 %v1180, 0.0
    %v1247 = vmax.f32 %v1185, 0.0
    %v1248 = vmax.f32 %v1190, 0.0
    %v1249 = vmax.f32 %v1195, 0.0
    %v1250 = vmax.f32 %v1200, 0.0
    %v1251 = vmax.f32 %v1205, 0.0
    %v1252 = vmax.f32 %v1210, 0.0
    %v1253 = vmax.f32 %v1215, 0.0
    %v1254 = vmax.f32 %v1220, 0.0
    %v1255 = vmax.f32 %v1225, 0.0
    %v1256 = vmax.f32 %v1230, 0.0
    %v1257 = vmax.f32 %v1235, 0.0
    %v1258 = vmax.f32 %v1240, 0.0
    %1259 = vst [vmem:[#allocation13] sm:$0xff] %v1243
    %1260 = vst [vmem:[#allocation13 + $0x8] sm:$0xff] %v1244
    %1261 = vst [vmem:[#allocation13 + $0x10] sm:$0xff] %v1245
    %1262 = vst [vmem:[#allocation13 + $0x18] sm:$0xff] %v1246
    %1263 = vst [vmem:[#allocation13 + $0x20] sm:$0xff] %v1247
    %1264 = vst [vmem:[#allocation13 + $0x28] sm:$0xff] %v1248
    %1265 = vst [vmem:[#allocation13 + $0x30] sm:$0xff] %v1249
    %1266 = vst [vmem:[#allocation13 + $0x38] sm:$0xff] %v1250
    %1267 = vst [vmem:[#allocation13 + $0x40] sm:$0xff] %v1251
    %1268 = vst [vmem:[#allocation13 + $0x48] sm:$0xff] %v1252
    %1269 = vst [vmem:[#allocation13 + $0x50] sm:$0xff] %v1253
    %1270 = vst [vmem:[#allocation13 + $0x58] sm:$0xff] %v1254
    %1271 = vst [vmem:[#allocation13 + $0x60] sm:$0xff] %v1255
    %1272 = vst [vmem:[#allocation13 + $0x68] sm:$0xff] %v1256
    %1273 = vst [vmem:[#allocation13 + $0x70] sm:$0xff] %v1257
    %1274 = vst [vmem:[#allocation13 + $0x78] sm:$0xff] %v1258
    // Predicated region
    $region70: #{tpu_custom_call.1} parent=1 // pred_check
      _
    $region71: #{tpu_custom_call.1} parent=1 // pred_check_branch
      %1276 = sbr.rel (0) target = $region73
    $region72: #{tpu_custom_call.1} parent=1 // pred_region
      %s1278 = ssub.s32 2048, 2048
      %1279 = vsyncadd [#allocation4], %s1278
      %s1280 = sshll.u32 [#allocation13], 4
      %s1281 = int_to_ptr.vmem [resolvable:$true] %s1280
      %1286 = dma.vmem_to_hbm [thread:$0]  %s1281, 2048, %s11, [#allocation4], 128, 128, 8
    $region73: #{tpu_custom_call.1} parent=1 // pred_fallthru
      _
    // Predicated region
    $region74: #{tpu_custom_call.1} parent=1 // pred_check
      _
    $region75: #{tpu_custom_call.1} parent=1 // pred_check_branch
      %1288 = sbr.rel (0) target = $region77
    $region76: #{tpu_custom_call.1} parent=1 // pred_region
      %1289 = dma.done [#allocation4], 2048
    $region77: #{tpu_custom_call.1} parent=1 // pred_fallthru
      _
    %1290 = vsyncpa [#allocation3], 1
    %1291 = vsyncpa [#allocation6], 1
    %1292 = vsyncpa [#allocation9], 1
    %1293 = vsyncpa [#allocation12], 1
    %1294 = vsyncpa [#allocation4], 1

</llo_original>
